<compile_context>
chip_gen: v7x
topology: tpu7x:2x2x1
jax: 0.10.0
libtpu: 0.0.40
codegen_flags: <defaults>
</compile_context>

<pallas_src>
import jax
import jax.numpy as jnp
from jax import lax
from jax.experimental import pallas as pl
from jax.experimental.pallas import tpu as pltpu

KH = KW = 5
PAD = 2


def _make_kernel(H, W, cb, rows):
    HW = H * W
    S = PAD * W + PAD          # largest |flat shift| of any tap (16 for 7x7)
    L = HW + 2 * S             # zero-padded flat image length (81 for 7x7)
    num_strips = cb // rows

    def kernel(x_ref, w_ref, o_ref, buf_ref):
        # x_ref:   (1, cb, HW)   input block, channels on sublanes
        # w_ref:   (cb, KH*KW)   per-channel taps
        # o_ref:   (1, cb, HW)
        # buf_ref: (cb, L)       zero-padded flat image (VMEM scratch)

        # ---- phase 1: build the zero-padded flat image ---------------------
        buf_ref[...] = jnp.zeros_like(buf_ref)
        buf_ref[:, S:S + HW] = x_ref[0].astype(jnp.float32)

        # ---- per-dw column-validity masks (computed once, live in vregs) ---
        # A tap with horizontal offset d = kw-PAD that crosses a row boundary
        # reads an element whose true column is < d (d>0) or >= W+d (d<0);
        # no valid read for that d ever touches those columns, so masking the
        # *source* once per dw kills exactly the row-crossed contributions.
        j = lax.broadcasted_iota(jnp.int32, (1, L), 1)
        col = (j - S) % W
        interior = jnp.logical_and(j >= S, j < S + HW)
        masks = []
        for kw in range(KW):
            d = kw - PAD
            if d == 0:
                masks.append(None)
                continue
            bad = (col < d) if d > 0 else (col >= W + d)
            masks.append(
                jnp.where(jnp.logical_and(interior, bad), 0.0, 1.0)
                .astype(jnp.float32))

        # ---- phase 2: strip loop; accumulator stays in registers -----------
        def strip(i, carry):
            r0 = pl.multiple_of(i * rows, rows)
            xp = buf_ref[pl.ds(r0, rows), :]                      # (rows, L)
            wv = w_ref[pl.ds(r0, rows), :].astype(jnp.float32)    # (rows, 25)
            # Pre-masked copies of the padded strip (dw==PAD needs no mask).
            xp_kw = [xp if masks[kw] is None else xp * masks[kw]
                     for kw in range(KW)]
            acc = jnp.zeros((rows, HW), jnp.float32)
            for kh in range(KH):
                for kw in range(KW):
                    a = S + (kh - PAD) * W + (kw - PAD)           # in [0, 2S]
                    k = kh * KW + kw
                    acc = acc + xp_kw[kw][:, a:a + HW] * wv[:, k:k + 1]
            o_ref[0, pl.ds(r0, rows), :] = acc.astype(o_ref.dtype)
            return carry

        lax.fori_loop(0, num_strips, strip, 0)

    return kernel


def _pick_channel_block(C):
    # Two channel blocks feed both TensorCores on v7x via
    # dimension_semantics=("parallel","parallel"); on 1-TC chips the extra
    # grid step is ~0.35us.  Fall back to a single block otherwise.
    if C % 2 == 0 and (C // 2) % 8 == 0:
        return C // 2
    return C


def _pick_rows(cb):
    for r in (32, 16, 8):
        if cb % r == 0:
            return r
    return 1


@jax.jit
def depthwise_conv2d(x_nchw, w_oihw):
    """Depthwise 5x5 conv, stride 1, pad 2.  x: (N,C,H,W), w: (C,1,5,5)."""
    N, C, H, W = x_nchw.shape
    assert w_oihw.shape == (C, 1, KH, KW)
    assert C % 8 == 0, "channel count must be a multiple of 8 (sublane tile)"
    assert W > PAD, "flat-shift trick needs W > PAD"

    cb = _pick_channel_block(C)
    rows = _pick_rows(cb)
    HW = H * W
    L = HW + 2 * (PAD * W + PAD)

    # Free (bitcast) reshapes -- no NCHW<->NHWC transposes anywhere.
    x = x_nchw.reshape(N, C, HW)
    w = w_oihw.reshape(C, KH * KW)

    kernel = _make_kernel(H, W, cb, rows)
    out = pl.pallas_call(
        kernel,
        out_shape=jax.ShapeDtypeStruct((N, C, HW), x_nchw.dtype),
        grid=(N, C // cb),
        in_specs=[
            pl.BlockSpec((1, cb, HW), lambda n, c: (n, c, 0)),
            pl.BlockSpec((cb, KH * KW), lambda n, c: (c, 0)),
        ],
        out_specs=pl.BlockSpec((1, cb, HW), lambda n, c: (n, c, 0)),
        scratch_shapes=[pltpu.VMEM((cb, L), jnp.float32)],
        compiler_params=pltpu.CompilerParams(
            dimension_semantics=("parallel", "parallel")),
    )(x, w)
    return out.reshape(N, C, H, W)


if __name__ == "__main__":
    # Shapes implied by the module: x (1, 2304, 7, 7), weight (2304, 1, 5, 5).
    N, C, H, W = 1, 2304, 7, 7

    key = jax.random.PRNGKey(0)
    kx, kw = jax.random.split(key)
    x = jax.random.normal(kx, (N, C, H, W), dtype=jnp.float32)
    wgt = jax.random.normal(kw, (C, 1, KH, KW), dtype=jnp.float32) * 0.05

    y = jax.block_until_ready(depthwise_conv2d(x, wgt))

    # Reference: XLA grouped conv with feature_group_count == C.
    ref = lax.conv_general_dilated(
        x, wgt, window_strides=(1, 1), padding=((PAD, PAD), (PAD, PAD)),
        dimension_numbers=("NCHW", "OIHW", "NCHW"), feature_group_count=C)

    assert y.shape == (N, C, H, W)
    assert jnp.allclose(y, ref, atol=1e-4, rtol=1e-4)

    print("KERNEL_OK")
</pallas_src>

<mosaic_0001>
module attributes {stable_mosaic.version = 11 : i64} {
  func.func @kernel(%arg0: i32, %arg1: i32, %arg2: memref<1x1152x49xf32, #tpu.memory_space<vmem>>, %arg3: memref<1152x25xf32, #tpu.memory_space<vmem>>, %arg4: memref<1x1152x49xf32, #tpu.memory_space<vmem>>, %arg5: memref<1152x81xf32, #tpu.memory_space<vmem>>) attributes {dimension_semantics = [#tpu.dimension_semantics<parallel>, #tpu.dimension_semantics<parallel>], iteration_bounds = array<i64: 1, 2>, scalar_prefetch = 0 : i64, scratch_operands = 1 : i64, tpu.core_type = #tpu.core_type<tc>, window_params = [{transform_indices = @transform_0, window_bounds = array<i64: 1, 1152, 49>}, {transform_indices = @transform_1, window_bounds = array<i64: 1152, 25>}, {transform_indices = @transform_2, window_bounds = array<i64: 1, 1152, 49>}]} {
    %cst = arith.constant 0.000000e+00 : f32
    %0 = vector.broadcast %cst : f32 to vector<1152x81xf32>
    %c0 = arith.constant 0 : index
    %c0_0 = arith.constant 0 : index
    %1 = vector.load %arg5[%c0, %c0_0] : memref<1152x81xf32, #tpu.memory_space<vmem>>, vector<1152x81xf32>
    tpu.vector_store %arg5[%c0, %c0_0], %0 {strides = array<i32>} : memref<1152x81xf32, #tpu.memory_space<vmem>>, vector<1152x81xf32>,
    %c0_1 = arith.constant 0 : index
    %c0_2 = arith.constant 0 : index
    %c0_3 = arith.constant 0 : index
    %2 = vector.load %arg2[%c0_1, %c0_2, %c0_3] : memref<1x1152x49xf32, #tpu.memory_space<vmem>>, vector<1x1152x49xf32>
    %3 = vector.shape_cast %2 : vector<1x1152x49xf32> to vector<1152x49xf32>
    %c0_4 = arith.constant 0 : index
    %c16 = arith.constant 16 : index
    %4 = vector.load %arg5[%c0_4, %c16] : memref<1152x81xf32, #tpu.memory_space<vmem>>, vector<1152x49xf32>
    tpu.vector_store %arg5[%c0_4, %c16], %3 {strides = array<i32>} : memref<1152x81xf32, #tpu.memory_space<vmem>>, vector<1152x49xf32>,
    %5 = tpu.iota {dimensions = array<i32: 1>} : vector<1x81xi32>
    %c16_i32 = arith.constant 16 : i32
    %6 = vector.broadcast %c16_i32 : i32 to vector<1x81xi32>
    %7 = arith.subi %5, %6 : vector<1x81xi32>
    %c7_i32 = arith.constant 7 : i32
    %c0_i32 = arith.constant 0 : i32
    %8 = arith.cmpi eq, %c7_i32, %c0_i32 : i32
    %c1_i32 = arith.constant 1 : i32
    %9 = arith.select %8, %c1_i32, %c7_i32 : i32
    %10 = vector.broadcast %9 : i32 to vector<1x81xi32>
    %11 = arith.remsi %7, %10 : vector<1x81xi32>
    %c0_i32_5 = arith.constant 0 : i32
    %12 = vector.broadcast %c0_i32_5 : i32 to vector<1x81xi32>
    %13 = arith.cmpi ne, %11, %12 : vector<1x81xi32>
    %c0_i32_6 = arith.constant 0 : i32
    %14 = vector.broadcast %c0_i32_6 : i32 to vector<1x81xi32>
    %15 = arith.cmpi slt, %11, %14 : vector<1x81xi32>
    %c0_i32_7 = arith.constant 0 : i32
    %16 = arith.cmpi slt, %9, %c0_i32_7 : i32
    %17 = vector.broadcast %16 : i1 to vector<1x81xi1>
    %18 = vector.broadcast %17 : vector<1x81xi1> to vector<1x81xi1>
    %19 = arith.xori %15, %18 : vector<1x81xi1>
    %20 = arith.andi %19, %13 : vector<1x81xi1>
    %21 = vector.broadcast %9 : i32 to vector<1x81xi32>
    %22 = arith.addi %11, %21 : vector<1x81xi32>
    %23 = arith.select %20, %22, %11 : vector<1x81xi1>, vector<1x81xi32>
    %c16_i32_8 = arith.constant 16 : i32
    %24 = vector.broadcast %c16_i32_8 : i32 to vector<1x81xi32>
    %25 = arith.cmpi sge, %5, %24 : vector<1x81xi32>
    %c65_i32 = arith.constant 65 : i32
    %26 = vector.broadcast %c65_i32 : i32 to vector<1x81xi32>
    %27 = arith.cmpi slt, %5, %26 : vector<1x81xi32>
    %28 = arith.andi %25, %27 : vector<1x81xi1>
    %c5_i32 = arith.constant 5 : i32
    %29 = vector.broadcast %c5_i32 : i32 to vector<1x81xi32>
    %30 = arith.cmpi sge, %23, %29 : vector<1x81xi32>
    %31 = arith.andi %28, %30 : vector<1x81xi1>
    %cst_9 = arith.constant 0.000000e+00 : f32
    %cst_10 = arith.constant 1.000000e+00 : f32
    %32 = vector.broadcast %cst_9 : f32 to vector<1x81xf32>
    %33 = vector.broadcast %cst_10 : f32 to vector<1x81xf32>
    %34 = arith.select %31, %32, %33 : vector<1x81xi1>, vector<1x81xf32>
    %c6_i32 = arith.constant 6 : i32
    %35 = vector.broadcast %c6_i32 : i32 to vector<1x81xi32>
    %36 = arith.cmpi sge, %23, %35 : vector<1x81xi32>
    %37 = arith.andi %28, %36 : vector<1x81xi1>
    %cst_11 = arith.constant 0.000000e+00 : f32
    %cst_12 = arith.constant 1.000000e+00 : f32
    %38 = vector.broadcast %cst_11 : f32 to vector<1x81xf32>
    %39 = vector.broadcast %cst_12 : f32 to vector<1x81xf32>
    %40 = arith.select %37, %38, %39 : vector<1x81xi1>, vector<1x81xf32>
    %c1_i32_13 = arith.constant 1 : i32
    %41 = vector.broadcast %c1_i32_13 : i32 to vector<1x81xi32>
    %42 = arith.cmpi slt, %23, %41 : vector<1x81xi32>
    %43 = arith.andi %28, %42 : vector<1x81xi1>
    %cst_14 = arith.constant 0.000000e+00 : f32
    %cst_15 = arith.constant 1.000000e+00 : f32
    %44 = vector.broadcast %cst_14 : f32 to vector<1x81xf32>
    %45 = vector.broadcast %cst_15 : f32 to vector<1x81xf32>
    %46 = arith.select %43, %44, %45 : vector<1x81xi1>, vector<1x81xf32>
    %c2_i32 = arith.constant 2 : i32
    %47 = vector.broadcast %c2_i32 : i32 to vector<1x81xi32>
    %48 = arith.cmpi slt, %23, %47 : vector<1x81xi32>
    %49 = arith.andi %28, %48 : vector<1x81xi1>
    %cst_16 = arith.constant 0.000000e+00 : f32
    %cst_17 = arith.constant 1.000000e+00 : f32
    %50 = vector.broadcast %cst_16 : f32 to vector<1x81xf32>
    %51 = vector.broadcast %cst_17 : f32 to vector<1x81xf32>
    %52 = arith.select %49, %50, %51 : vector<1x81xi1>, vector<1x81xf32>
    %c0_i32_18 = arith.constant 0 : i32
    %c36_i32 = arith.constant 36 : i32
    %53 = arith.addi %c0_i32_18, %c36_i32 : i32
    %c1_i32_19 = arith.constant 1 : i32
    scf.for %arg6 = %c0_i32_18 to %53 step %c1_i32_19  : i32 {
      %c32_i32 = arith.constant 32 : i32
      %54 = arith.muli %arg6, %c32_i32 : i32
      %55 = tpu.assume_multiple %54, 32 : i32
      %56 = arith.index_cast %55 : i32 to index
      %c0_21 = arith.constant 0 : index
      %57 = vector.load %arg5[%56, %c0_21] : memref<1152x81xf32, #tpu.memory_space<vmem>>, vector<32x81xf32>
      %58 = arith.index_cast %55 : i32 to index
      %c0_22 = arith.constant 0 : index
      %59 = vector.load %arg3[%58, %c0_22] : memref<1152x25xf32, #tpu.memory_space<vmem>>, vector<32x25xf32>
      %60 = vector.broadcast %34 : vector<1x81xf32> to vector<32x81xf32>
      %61 = arith.mulf %57, %60 : vector<32x81xf32>
      %62 = vector.broadcast %40 : vector<1x81xf32> to vector<32x81xf32>
      %63 = arith.mulf %57, %62 : vector<32x81xf32>
      %64 = vector.broadcast %46 : vector<1x81xf32> to vector<32x81xf32>
      %65 = arith.mulf %57, %64 : vector<32x81xf32>
      %66 = vector.broadcast %52 : vector<1x81xf32> to vector<32x81xf32>
      %67 = arith.mulf %57, %66 : vector<32x81xf32>
      %cst_23 = arith.constant 0.000000e+00 : f32
      %68 = vector.broadcast %cst_23 : f32 to vector<32x49xf32>
      %69 = vector.extract_strided_slice %61 {offsets = [0, 0], sizes = [32, 49], strides = [1, 1]} : vector<32x81xf32> to vector<32x49xf32>
      %70 = vector.extract_strided_slice %59 {offsets = [0, 0], sizes = [32, 1], strides = [1, 1]} : vector<32x25xf32> to vector<32x1xf32>
      %71 = vector.broadcast %70 : vector<32x1xf32> to vector<32x49xf32>
      %72 = arith.mulf %69, %71 : vector<32x49xf32>
      %73 = arith.addf %68, %72 : vector<32x49xf32>
      %74 = vector.extract_strided_slice %63 {offsets = [0, 1], sizes = [32, 49], strides = [1, 1]} : vector<32x81xf32> to vector<32x49xf32>
      %75 = vector.extract_strided_slice %59 {offsets = [0, 1], sizes = [32, 1], strides = [1, 1]} : vector<32x25xf32> to vector<32x1xf32>
      %76 = vector.broadcast %75 : vector<32x1xf32> to vector<32x49xf32>
      %77 = arith.mulf %74, %76 : vector<32x49xf32>
      %78 = arith.addf %73, %77 : vector<32x49xf32>
      %79 = vector.extract_strided_slice %57 {offsets = [0, 2], sizes = [32, 49], strides = [1, 1]} : vector<32x81xf32> to vector<32x49xf32>
      %80 = vector.extract_strided_slice %59 {offsets = [0, 2], sizes = [32, 1], strides = [1, 1]} : vector<32x25xf32> to vector<32x1xf32>
      %81 = vector.broadcast %80 : vector<32x1xf32> to vector<32x49xf32>
      %82 = arith.mulf %79, %81 : vector<32x49xf32>
      %83 = arith.addf %78, %82 : vector<32x49xf32>
      %84 = vector.extract_strided_slice %65 {offsets = [0, 3], sizes = [32, 49], strides = [1, 1]} : vector<32x81xf32> to vector<32x49xf32>
      %85 = vector.extract_strided_slice %59 {offsets = [0, 3], sizes = [32, 1], strides = [1, 1]} : vector<32x25xf32> to vector<32x1xf32>
      %86 = vector.broadcast %85 : vector<32x1xf32> to vector<32x49xf32>
      %87 = arith.mulf %84, %86 : vector<32x49xf32>
      %88 = arith.addf %83, %87 : vector<32x49xf32>
      %89 = vector.extract_strided_slice %67 {offsets = [0, 4], sizes = [32, 49], strides = [1, 1]} : vector<32x81xf32> to vector<32x49xf32>
      %90 = vector.extract_strided_slice %59 {offsets = [0, 4], sizes = [32, 1], strides = [1, 1]} : vector<32x25xf32> to vector<32x1xf32>
      %91 = vector.broadcast %90 : vector<32x1xf32> to vector<32x49xf32>
      %92 = arith.mulf %89, %91 : vector<32x49xf32>
      %93 = arith.addf %88, %92 : vector<32x49xf32>
      %94 = vector.extract_strided_slice %61 {offsets = [0, 7], sizes = [32, 49], strides = [1, 1]} : vector<32x81xf32> to vector<32x49xf32>
      %95 = vector.extract_strided_slice %59 {offsets = [0, 5], sizes = [32, 1], strides = [1, 1]} : vector<32x25xf32> to vector<32x1xf32>
      %96 = vector.broadcast %95 : vector<32x1xf32> to vector<32x49xf32>
      %97 = arith.mulf %94, %96 : vector<32x49xf32>
      %98 = arith.addf %93, %97 : vector<32x49xf32>
      %99 = vector.extract_strided_slice %63 {offsets = [0, 8], sizes = [32, 49], strides = [1, 1]} : vector<32x81xf32> to vector<32x49xf32>
      %100 = vector.extract_strided_slice %59 {offsets = [0, 6], sizes = [32, 1], strides = [1, 1]} : vector<32x25xf32> to vector<32x1xf32>
      %101 = vector.broadcast %100 : vector<32x1xf32> to vector<32x49xf32>
      %102 = arith.mulf %99, %101 : vector<32x49xf32>
      %103 = arith.addf %98, %102 : vector<32x49xf32>
      %104 = vector.extract_strided_slice %57 {offsets = [0, 9], sizes = [32, 49], strides = [1, 1]} : vector<32x81xf32> to vector<32x49xf32>
      %105 = vector.extract_strided_slice %59 {offsets = [0, 7], sizes = [32, 1], strides = [1, 1]} : vector<32x25xf32> to vector<32x1xf32>
      %106 = vector.broadcast %105 : vector<32x1xf32> to vector<32x49xf32>
      %107 = arith.mulf %104, %106 : vector<32x49xf32>
      %108 = arith.addf %103, %107 : vector<32x49xf32>
      %109 = vector.extract_strided_slice %65 {offsets = [0, 10], sizes = [32, 49], strides = [1, 1]} : vector<32x81xf32> to vector<32x49xf32>
      %110 = vector.extract_strided_slice %59 {offsets = [0, 8], sizes = [32, 1], strides = [1, 1]} : vector<32x25xf32> to vector<32x1xf32>
      %111 = vector.broadcast %110 : vector<32x1xf32> to vector<32x49xf32>
      %112 = arith.mulf %109, %111 : vector<32x49xf32>
      %113 = arith.addf %108, %112 : vector<32x49xf32>
      %114 = vector.extract_strided_slice %67 {offsets = [0, 11], sizes = [32, 49], strides = [1, 1]} : vector<32x81xf32> to vector<32x49xf32>
      %115 = vector.extract_strided_slice %59 {offsets = [0, 9], sizes = [32, 1], strides = [1, 1]} : vector<32x25xf32> to vector<32x1xf32>
      %116 = vector.broadcast %115 : vector<32x1xf32> to vector<32x49xf32>
      %117 = arith.mulf %114, %116 : vector<32x49xf32>
      %118 = arith.addf %113, %117 : vector<32x49xf32>
      %119 = vector.extract_strided_slice %61 {offsets = [0, 14], sizes = [32, 49], strides = [1, 1]} : vector<32x81xf32> to vector<32x49xf32>
      %120 = vector.extract_strided_slice %59 {offsets = [0, 10], sizes = [32, 1], strides = [1, 1]} : vector<32x25xf32> to vector<32x1xf32>
      %121 = vector.broadcast %120 : vector<32x1xf32> to vector<32x49xf32>
      %122 = arith.mulf %119, %121 : vector<32x49xf32>
      %123 = arith.addf %118, %122 : vector<32x49xf32>
      %124 = vector.extract_strided_slice %63 {offsets = [0, 15], sizes = [32, 49], strides = [1, 1]} : vector<32x81xf32> to vector<32x49xf32>
      %125 = vector.extract_strided_slice %59 {offsets = [0, 11], sizes = [32, 1], strides = [1, 1]} : vector<32x25xf32> to vector<32x1xf32>
      %126 = vector.broadcast %125 : vector<32x1xf32> to vector<32x49xf32>
      %127 = arith.mulf %124, %126 : vector<32x49xf32>
      %128 = arith.addf %123, %127 : vector<32x49xf32>
      %129 = vector.extract_strided_slice %57 {offsets = [0, 16], sizes = [32, 49], strides = [1, 1]} : vector<32x81xf32> to vector<32x49xf32>
      %130 = vector.extract_strided_slice %59 {offsets = [0, 12], sizes = [32, 1], strides = [1, 1]} : vector<32x25xf32> to vector<32x1xf32>
      %131 = vector.broadcast %130 : vector<32x1xf32> to vector<32x49xf32>
      %132 = arith.mulf %129, %131 : vector<32x49xf32>
      %133 = arith.addf %128, %132 : vector<32x49xf32>
      %134 = vector.extract_strided_slice %65 {offsets = [0, 17], sizes = [32, 49], strides = [1, 1]} : vector<32x81xf32> to vector<32x49xf32>
      %135 = vector.extract_strided_slice %59 {offsets = [0, 13], sizes = [32, 1], strides = [1, 1]} : vector<32x25xf32> to vector<32x1xf32>
      %136 = vector.broadcast %135 : vector<32x1xf32> to vector<32x49xf32>
      %137 = arith.mulf %134, %136 : vector<32x49xf32>
      %138 = arith.addf %133, %137 : vector<32x49xf32>
      %139 = vector.extract_strided_slice %67 {offsets = [0, 18], sizes = [32, 49], strides = [1, 1]} : vector<32x81xf32> to vector<32x49xf32>
      %140 = vector.extract_strided_slice %59 {offsets = [0, 14], sizes = [32, 1], strides = [1, 1]} : vector<32x25xf32> to vector<32x1xf32>
      %141 = vector.broadcast %140 : vector<32x1xf32> to vector<32x49xf32>
      %142 = arith.mulf %139, %141 : vector<32x49xf32>
      %143 = arith.addf %138, %142 : vector<32x49xf32>
      %144 = vector.extract_strided_slice %61 {offsets = [0, 21], sizes = [32, 49], strides = [1, 1]} : vector<32x81xf32> to vector<32x49xf32>
      %145 = vector.extract_strided_slice %59 {offsets = [0, 15], sizes = [32, 1], strides = [1, 1]} : vector<32x25xf32> to vector<32x1xf32>
      %146 = vector.broadcast %145 : vector<32x1xf32> to vector<32x49xf32>
      %147 = arith.mulf %144, %146 : vector<32x49xf32>
      %148 = arith.addf %143, %147 : vector<32x49xf32>
      %149 = vector.extract_strided_slice %63 {offsets = [0, 22], sizes = [32, 49], strides = [1, 1]} : vector<32x81xf32> to vector<32x49xf32>
      %150 = vector.extract_strided_slice %59 {offsets = [0, 16], sizes = [32, 1], strides = [1, 1]} : vector<32x25xf32> to vector<32x1xf32>
      %151 = vector.broadcast %150 : vector<32x1xf32> to vector<32x49xf32>
      %152 = arith.mulf %149, %151 : vector<32x49xf32>
      %153 = arith.addf %148, %152 : vector<32x49xf32>
      %154 = vector.extract_strided_slice %57 {offsets = [0, 23], sizes = [32, 49], strides = [1, 1]} : vector<32x81xf32> to vector<32x49xf32>
      %155 = vector.extract_strided_slice %59 {offsets = [0, 17], sizes = [32, 1], strides = [1, 1]} : vector<32x25xf32> to vector<32x1xf32>
      %156 = vector.broadcast %155 : vector<32x1xf32> to vector<32x49xf32>
      %157 = arith.mulf %154, %156 : vector<32x49xf32>
      %158 = arith.addf %153, %157 : vector<32x49xf32>
      %159 = vector.extract_strided_slice %65 {offsets = [0, 24], sizes = [32, 49], strides = [1, 1]} : vector<32x81xf32> to vector<32x49xf32>
      %160 = vector.extract_strided_slice %59 {offsets = [0, 18], sizes = [32, 1], strides = [1, 1]} : vector<32x25xf32> to vector<32x1xf32>
      %161 = vector.broadcast %160 : vector<32x1xf32> to vector<32x49xf32>
      %162 = arith.mulf %159, %161 : vector<32x49xf32>
      %163 = arith.addf %158, %162 : vector<32x49xf32>
      %164 = vector.extract_strided_slice %67 {offsets = [0, 25], sizes = [32, 49], strides = [1, 1]} : vector<32x81xf32> to vector<32x49xf32>
      %165 = vector.extract_strided_slice %59 {offsets = [0, 19], sizes = [32, 1], strides = [1, 1]} : vector<32x25xf32> to vector<32x1xf32>
      %166 = vector.broadcast %165 : vector<32x1xf32> to vector<32x49xf32>
      %167 = arith.mulf %164, %166 : vector<32x49xf32>
      %168 = arith.addf %163, %167 : vector<32x49xf32>
      %169 = vector.extract_strided_slice %61 {offsets = [0, 28], sizes = [32, 49], strides = [1, 1]} : vector<32x81xf32> to vector<32x49xf32>
      %170 = vector.extract_strided_slice %59 {offsets = [0, 20], sizes = [32, 1], strides = [1, 1]} : vector<32x25xf32> to vector<32x1xf32>
      %171 = vector.broadcast %170 : vector<32x1xf32> to vector<32x49xf32>
      %172 = arith.mulf %169, %171 : vector<32x49xf32>
      %173 = arith.addf %168, %172 : vector<32x49xf32>
      %174 = vector.extract_strided_slice %63 {offsets = [0, 29], sizes = [32, 49], strides = [1, 1]} : vector<32x81xf32> to vector<32x49xf32>
      %175 = vector.extract_strided_slice %59 {offsets = [0, 21], sizes = [32, 1], strides = [1, 1]} : vector<32x25xf32> to vector<32x1xf32>
      %176 = vector.broadcast %175 : vector<32x1xf32> to vector<32x49xf32>
      %177 = arith.mulf %174, %176 : vector<32x49xf32>
      %178 = arith.addf %173, %177 : vector<32x49xf32>
      %179 = vector.extract_strided_slice %57 {offsets = [0, 30], sizes = [32, 49], strides = [1, 1]} : vector<32x81xf32> to vector<32x49xf32>
      %180 = vector.extract_strided_slice %59 {offsets = [0, 22], sizes = [32, 1], strides = [1, 1]} : vector<32x25xf32> to vector<32x1xf32>
      %181 = vector.broadcast %180 : vector<32x1xf32> to vector<32x49xf32>
      %182 = arith.mulf %179, %181 : vector<32x49xf32>
      %183 = arith.addf %178, %182 : vector<32x49xf32>
      %184 = vector.extract_strided_slice %65 {offsets = [0, 31], sizes = [32, 49], strides = [1, 1]} : vector<32x81xf32> to vector<32x49xf32>
      %185 = vector.extract_strided_slice %59 {offsets = [0, 23], sizes = [32, 1], strides = [1, 1]} : vector<32x25xf32> to vector<32x1xf32>
      %186 = vector.broadcast %185 : vector<32x1xf32> to vector<32x49xf32>
      %187 = arith.mulf %184, %186 : vector<32x49xf32>
      %188 = arith.addf %183, %187 : vector<32x49xf32>
      %189 = vector.extract_strided_slice %67 {offsets = [0, 32], sizes = [32, 49], strides = [1, 1]} : vector<32x81xf32> to vector<32x49xf32>
      %190 = vector.extract_strided_slice %59 {offsets = [0, 24], sizes = [32, 1], strides = [1, 1]} : vector<32x25xf32> to vector<32x1xf32>
      %191 = vector.broadcast %190 : vector<32x1xf32> to vector<32x49xf32>
      %192 = arith.mulf %189, %191 : vector<32x49xf32>
      %193 = arith.addf %188, %192 : vector<32x49xf32>
      %c0_24 = arith.constant 0 : index
      %194 = arith.index_cast %55 : i32 to index
      %c0_25 = arith.constant 0 : index
      %195 = vector.load %arg4[%c0_24, %194, %c0_25] : memref<1x1152x49xf32, #tpu.memory_space<vmem>>, vector<1x32x49xf32>
      %196 = vector.shape_cast %195 : vector<1x32x49xf32> to vector<32x49xf32>
      %197 = vector.shape_cast %193 : vector<32x49xf32> to vector<1x32x49xf32>
      tpu.vector_store %arg4[%c0_24, %194, %c0_25], %197 {strides = array<i32>} : memref<1x1152x49xf32, #tpu.memory_space<vmem>>, vector<1x32x49xf32>,
    }
    %c36_i32_20 = arith.constant 36 : i32
    return
  }
  func.func @transform_0(%arg0: i32, %arg1: i32) -> (i32, i32, i32) {
    %c0_i32 = arith.constant 0 : i32
    %c0_i32_0 = arith.constant 0 : i32
    return %arg0, %arg1, %c0_i32 : i32, i32, i32
  }
  func.func @transform_1(%arg0: i32, %arg1: i32) -> (i32, i32) {
    %c0_i32 = arith.constant 0 : i32
    %c0_i32_0 = arith.constant 0 : i32
    return %arg1, %c0_i32 : i32, i32
  }
  func.func @transform_2(%arg0: i32, %arg1: i32) -> (i32, i32, i32) {
    %c0_i32 = arith.constant 0 : i32
    %c0_i32_0 = arith.constant 0 : i32
    return %arg0, %arg1, %c0_i32 : i32, i32, i32
  }
}

</mosaic_0001>

<llo_original>
// kernel: depthwise_conv2d.1
$region0: #{depthwise_conv2d.1}
  #allocation0 [shape = 'u32[]', space=smem, size = 0x4, offset = 0x4, fixed_abs, tag = 'smem constant byte address 0x4 - core index']
  #allocation1 [shape = 'u32[144,128]{1,0:T(1,128)}', space=vmem, size = 0x12000, scoped, tag = 'internal scratch']
  #allocation2 [shape = 'f32[1152,81]{1,0:T(8,128)}', space=vmem, size = 0x90000, scoped, tag = 'scratch operand']
  %s0 = inlined_call_operand.vmem [shape: f32[1,2304,49], index: 0, kind: input, shape index: {}]
  %s1 = inlined_call_operand.vmem [shape: f32[2304,25], index: 1, kind: input, shape index: {}]
  %s2 = inlined_call_operand.vmem [shape: f32[1,2304,49], index: 2, kind: output, shape index: {}]
  %s3 = sld [smem:[#allocation0]]
  $region48: #{depthwise_conv2d.1} parent=0
    _
  %s5 = ssub.s32 1, %s3
  %s6 = scalar_select 0, %s5, %s3
  loop: start=0, step=1, limit=4
  $region2: #{depthwise_conv2d.1} parent=0 // loop_pre_header
    _
  $region3: #{depthwise_conv2d.1} parent=0 // loop_header
    %s8 = sphi 0, %s12
    %p9 = scmp.ge.s32.totalorder %s8, 4
    %s15 = sphi 0, %s27
    %s16 = sphi 0, %s23
    %s17 = sphi 0, %s15
    %s18 = sphi 0, %s16
    %s19 = sphi 0, %s17
    %s20 = sphi 0, %s18
    %s32 = sphi 0, %s34
    %s35 = sphi 0, %s32
    %s36 = sphi 0, %s35
    %s52 = sphi 0, %s36
    %s58 = sphi 0, %s60
    %s61 = sphi 0, %s58
    %s62 = sphi 0, %s61
    %s78 = sphi 0, %s62
    %s86 = sphi 0, %s88
    %s89 = sphi 0, %s86
    %s90 = sphi 0, %s89
    %s106 = sphi 0, %s90
  $region4: #{depthwise_conv2d.1} parent=0 // loop_header_branch
    %11 = sbr.rel (%p9) target = $region8
  $region5: #{depthwise_conv2d.1} parent=0 // loop_body
    %s13 = ssub.s32 %s8, 1
    %s14 = ssub.s32 %s8, 2
    %s21 = sadd.s32 1, %s16
    %p22 = scmp.ge.s32.totalorder %s21, 2
    %s23 = scalar_select %p22, 0, %s21
    %s24 = sadd.s32 1, %s15
    %s25 = scalar_select %p22, %s24, %s15
    %p26 = scmp.ge.s32.totalorder %s25, 1
    %s27 = scalar_select %p26, 0, %s25
    %s28 = ssub.s32 %s15, %s27
    %s29 = ssub.s32 %s16, %s23
    %s30 = sor.u32 %s28, %s29
    %p31 = scmp.eq.s32.totalorder %s30, 0
    %s33 = sadd.s32 %s32, 1
    %s34 = scalar_select %p31, %s32, %s33
    %p37 = pneg %p31
    %p38 = scmp.eq.s32.totalorder %s8, 1
    %p39 = por %p37, %p38
    %p40 = scmp.ne.s32.totalorder %s32, %s35
    %p41 = scmp.eq.s32.totalorder %s8, 0
    %p42 = por %p40, %p41
    %p43 = scmp.ne.s32.totalorder %s32, %s35
    %p44 = scmp.eq.s32.totalorder %s13, 1
    %p45 = por %p43, %p44
    %p46 = scmp.ne.s32.totalorder %s35, %s36
    %p47 = scmp.eq.s32.totalorder %s13, 0
    %p48 = por %p46, %p47
    %p49 = scmp.ne.s32.totalorder %s35, %s36
    %p50 = scmp.eq.s32.totalorder %s14, 1
    %p51 = por %p49, %p50
    %p53 = scmp.ne.s32.totalorder %s36, %s52
    %p54 = scmp.eq.s32.totalorder %s14, 0
    %p55 = por %p53, %p54
    %s56 = ssub.s32 %s16, %s23
    %p57 = scmp.eq.s32.totalorder %s56, 0
    %s59 = sadd.s32 %s58, 1
    %s60 = scalar_select %p57, %s58, %s59
    %p63 = pneg %p57
    %p64 = scmp.eq.s32.totalorder %s8, 1
    %p65 = por %p63, %p64
    %p66 = scmp.ne.s32.totalorder %s58, %s61
    %p67 = scmp.eq.s32.totalorder %s8, 0
    %p68 = por %p66, %p67
    %p69 = scmp.ne.s32.totalorder %s58, %s61
    %p70 = scmp.eq.s32.totalorder %s13, 1
    %p71 = por %p69, %p70
    %p72 = scmp.ne.s32.totalorder %s61, %s62
    %p73 = scmp.eq.s32.totalorder %s13, 0
    %p74 = por %p72, %p73
    %p75 = scmp.ne.s32.totalorder %s61, %s62
    %p76 = scmp.eq.s32.totalorder %s14, 1
    %p77 = por %p75, %p76
    %p79 = scmp.ne.s32.totalorder %s62, %s78
    %p80 = scmp.eq.s32.totalorder %s14, 0
    %p81 = por %p79, %p80
    %s82 = ssub.s32 %s15, %s27
    %s83 = ssub.s32 %s16, %s23
    %s84 = sor.u32 %s82, %s83
    %p85 = scmp.eq.s32.totalorder %s84, 0
    %s87 = sadd.s32 %s86, 1
    %s88 = scalar_select %p85, %s86, %s87
    %p91 = pneg %p85
    %p92 = scmp.eq.s32.totalorder %s8, 1
    %p93 = por %p91, %p92
    %p94 = scmp.ne.s32.totalorder %s86, %s89
    %p95 = scmp.eq.s32.totalorder %s8, 0
    %p96 = por %p94, %p95
    %p97 = scmp.ne.s32.totalorder %s86, %s89
    %p98 = scmp.eq.s32.totalorder %s13, 1
    %p99 = por %p97, %p98
    %p100 = scmp.ne.s32.totalorder %s89, %s90
    %p101 = scmp.eq.s32.totalorder %s13, 0
    %p102 = por %p100, %p101
    %p103 = scmp.ne.s32.totalorder %s89, %s90
    %p104 = scmp.eq.s32.totalorder %s14, 1
    %p105 = por %p103, %p104
    %p107 = scmp.ne.s32.totalorder %s90, %s106
    %p108 = scmp.eq.s32.totalorder %s14, 0
    %p109 = por %p107, %p108
    %p110 = scmp.le.s32.totalorder 1, %s8
    %p111 = scmp.lt.s32.totalorder %s8, 3
    %p112 = pnand %p110, %p111
    %p113 = pneg %p112
    // Predicated region
    $region9: #{depthwise_conv2d.1} parent=5 // pred_check
      _
    $region10: #{depthwise_conv2d.1} parent=5 // pred_check_branch
      %115 = sbr.rel (%p112) target = $region12
    $region11: #{depthwise_conv2d.1} parent=5 // pred_region
      %s116 = ssub.s32 %s8, 1
    $region12: #{depthwise_conv2d.1} parent=5 // pred_fallthru
      _
    %p117 = scmp.lt.s32.totalorder %s8, 2
    // Predicated region
    $region13: #{depthwise_conv2d.1} parent=5 // pred_check
      %p118 = pneg %p117
    $region14: #{depthwise_conv2d.1} parent=5 // pred_check_branch
      %120 = sbr.rel (%p118) target = $region16
    $region15: #{depthwise_conv2d.1} parent=5 // pred_region
      // Predicated region
      $region17: #{depthwise_conv2d.1} parent=15 // pred_check
        %p121 = pneg %p42
      $region18: #{depthwise_conv2d.1} parent=15 // pred_check_branch
        %123 = sbr.rel (%p121) target = $region20
      $region19: #{depthwise_conv2d.1} parent=15 // pred_region
        %s124 = smul.u32 144, %s16
        %p125 = scmp.lt.s32.totalorder %s15, 0
        %s126 = scalar_select %p125, %s15, 0
        %p127 = scmp.lt.s32.totalorder %s124, 287
        %s128 = scalar_select %p127, %s124, 287
        %s129 = smul.addr %s126, 288
        %s130 = sadd.s32 %s128, %s129
        %s131 = smul.addr %s130, 8
        %s132 = scalar_lea.vmem %s0, %s131
        %s133 = smul.u32 144, %s16
      $region20: #{depthwise_conv2d.1} parent=15 // pred_fallthru
        _
      // Predicated region
      $region21: #{depthwise_conv2d.1} parent=15 // pred_check
        %p134 = pneg %p68
      $region22: #{depthwise_conv2d.1} parent=15 // pred_check_branch
        %136 = sbr.rel (%p134) target = $region24
      $region23: #{depthwise_conv2d.1} parent=15 // pred_region
        %s137 = smul.u32 144, %s16
        %p138 = scmp.lt.s32.totalorder %s137, 287
        %s139 = scalar_select %p138, %s137, 287
        %s140 = smul.addr %s139, 8
        %s141 = scalar_lea.vmem %s1, %s140
        %s142 = smul.u32 144, %s16
      $region24: #{depthwise_conv2d.1} parent=15 // pred_fallthru
        _
    $region16: #{depthwise_conv2d.1} parent=5 // pred_fallthru
      _
    %p143 = scmp.le.s32.totalorder 1, %s8
    %p144 = scmp.lt.s32.totalorder %s8, 3
    %p145 = pnand %p143, %p144
    %p146 = pneg %p145
    // Predicated region
    $region25: #{depthwise_conv2d.1} parent=5 // pred_check
      _
    $region26: #{depthwise_conv2d.1} parent=5 // pred_check_branch
      %148 = sbr.rel (%p145) target = $region28
    $region27: #{depthwise_conv2d.1} parent=5 // pred_region
      %s149 = ssub.s32 %s8, 1
      %s150 = smul.u32 144, %s18
      %p151 = scmp.lt.s32.totalorder %s17, 0
      %s152 = scalar_select %p151, %s17, 0
      %p153 = scmp.lt.s32.totalorder %s150, 287
      %s154 = scalar_select %p153, %s150, 287
      %s155 = smul.addr %s152, 288
      %s156 = sadd.s32 %s154, %s155
      %s157 = smul.addr %s156, 8
      %s158 = scalar_lea.vmem %s0, %s157
      %p159 = pneg %p48
      %p160 = pneg %p45
      %s161 = smul.u32 144, %s18
      %p162 = scmp.lt.s32.totalorder %s161, 287
      %s163 = scalar_select %p162, %s161, 287
      %s164 = smul.addr %s163, 8
      %s165 = scalar_lea.vmem %s1, %s164
      %p166 = pneg %p74
      %p167 = pneg %p71
      %p168 = pneg %p102
      %p169 = pneg %p99
      %s170 = smul.u32 144, %s18
      %p171 = scmp.lt.s32.totalorder %s17, 0
      %s172 = scalar_select %p171, %s17, 0
      %p173 = scmp.lt.s32.totalorder %s170, 287
      %s174 = scalar_select %p173, %s170, 287
      %s175 = smul.addr %s172, 288
      %s176 = sadd.s32 %s174, %s175
      %s177 = smul.addr %s176, 8
      %s178 = scalar_lea.vmem %s2, %s177
      %s179 = smul.u32 144, %s18
      %p180 = scmp.lt.s32.totalorder %s17, 0
      %s181 = scalar_select %p180, %s17, 0
      %p182 = scmp.lt.s32.totalorder %s179, 287
      %s183 = scalar_select %p182, %s179, 287
      %s184 = smul.addr %s181, 288
      %s185 = sadd.s32 %s183, %s184
      %s186 = smul.addr %s185, 8
      %s187 = scalar_lea.vmem %s0, %s186
      %s188 = smul.u32 144, %s18
      %s189 = smul.u32 144, %s18
      %p190 = scmp.lt.s32.totalorder %s189, 287
      %s191 = scalar_select %p190, %s189, 287
      %s192 = smul.addr %s191, 8
      %s193 = scalar_lea.vmem %s1, %s192
      %s194 = smul.u32 144, %s18
      %s195 = smul.u32 144, %s18
      %p196 = scmp.lt.s32.totalorder %s17, 0
      %s197 = scalar_select %p196, %s17, 0
      %p198 = scmp.lt.s32.totalorder %s195, 287
      %s199 = scalar_select %p198, %s195, 287
      %s200 = smul.addr %s197, 288
      %s201 = sadd.s32 %s199, %s200
      %s202 = smul.addr %s201, 8
      %s203 = scalar_lea.vmem %s2, %s202
      %s204 = smul.u32 144, %s18
      %vm205 = vcmask 662528
      %206 = vst.msk [vmem:[#allocation2] sm:$0xff] %vm205, 0.0
      %207 = vst.msk [vmem:[#allocation2 + $0x8] sm:$0xff] %vm205, 0.0
      %208 = vst.msk [vmem:[#allocation2 + $0x10] sm:$0xff] %vm205, 0.0
      %209 = vst.msk [vmem:[#allocation2 + $0x18] sm:$0xff] %vm205, 0.0
      %210 = vst.msk [vmem:[#allocation2 + $0x20] sm:$0xff] %vm205, 0.0
      %211 = vst.msk [vmem:[#allocation2 + $0x28] sm:$0xff] %vm205, 0.0
      %212 = vst.msk [vmem:[#allocation2 + $0x30] sm:$0xff] %vm205, 0.0
      %213 = vst.msk [vmem:[#allocation2 + $0x38] sm:$0xff] %vm205, 0.0
      %214 = vst.msk [vmem:[#allocation2 + $0x40] sm:$0xff] %vm205, 0.0
      %215 = vst.msk [vmem:[#allocation2 + $0x48] sm:$0xff] %vm205, 0.0
      %216 = vst.msk [vmem:[#allocation2 + $0x50] sm:$0xff] %vm205, 0.0
      %217 = vst.msk [vmem:[#allocation2 + $0x58] sm:$0xff] %vm205, 0.0
      %218 = vst.msk [vmem:[#allocation2 + $0x60] sm:$0xff] %vm205, 0.0
      %219 = vst.msk [vmem:[#allocation2 + $0x68] sm:$0xff] %vm205, 0.0
      %220 = vst.msk [vmem:[#allocation2 + $0x70] sm:$0xff] %vm205, 0.0
      %221 = vst.msk [vmem:[#allocation2 + $0x78] sm:$0xff] %vm205, 0.0
      %222 = vst.msk [vmem:[#allocation2 + $0x80] sm:$0xff] %vm205, 0.0
      %223 = vst.msk [vmem:[#allocation2 + $0x88] sm:$0xff] %vm205, 0.0
      %224 = vst.msk [vmem:[#allocation2 + $0x90] sm:$0xff] %vm205, 0.0
      %225 = vst.msk [vmem:[#allocation2 + $0x98] sm:$0xff] %vm205, 0.0
      %226 = vst.msk [vmem:[#allocation2 + $0xa0] sm:$0xff] %vm205, 0.0
      %227 = vst.msk [vmem:[#allocation2 + $0xa8] sm:$0xff] %vm205, 0.0
      %228 = vst.msk [vmem:[#allocation2 + $0xb0] sm:$0xff] %vm205, 0.0
      %229 = vst.msk [vmem:[#allocation2 + $0xb8] sm:$0xff] %vm205, 0.0
      %230 = vst.msk [vmem:[#allocation2 + $0xc0] sm:$0xff] %vm205, 0.0
      %231 = vst.msk [vmem:[#allocation2 + $0xc8] sm:$0xff] %vm205, 0.0
      %232 = vst.msk [vmem:[#allocation2 + $0xd0] sm:$0xff] %vm205, 0.0
      %233 = vst.msk [vmem:[#allocation2 + $0xd8] sm:$0xff] %vm205, 0.0
      %234 = vst.msk [vmem:[#allocation2 + $0xe0] sm:$0xff] %vm205, 0.0
      %235 = vst.msk [vmem:[#allocation2 + $0xe8] sm:$0xff] %vm205, 0.0
      %236 = vst.msk [vmem:[#allocation2 + $0xf0] sm:$0xff] %vm205, 0.0
      %237 = vst.msk [vmem:[#allocation2 + $0xf8] sm:$0xff] %vm205, 0.0
      %238 = vst.msk [vmem:[#allocation2 + $0x100] sm:$0xff] %vm205, 0.0
      %239 = vst.msk [vmem:[#allocation2 + $0x108] sm:$0xff] %vm205, 0.0
      %240 = vst.msk [vmem:[#allocation2 + $0x110] sm:$0xff] %vm205, 0.0
      %241 = vst.msk [vmem:[#allocation2 + $0x118] sm:$0xff] %vm205, 0.0
      %242 = vst.msk [vmem:[#allocation2 + $0x120] sm:$0xff] %vm205, 0.0
      %243 = vst.msk [vmem:[#allocation2 + $0x128] sm:$0xff] %vm205, 0.0
      %244 = vst.msk [vmem:[#allocation2 + $0x130] sm:$0xff] %vm205, 0.0
      %245 = vst.msk [vmem:[#allocation2 + $0x138] sm:$0xff] %vm205, 0.0
      %246 = vst.msk [vmem:[#allocation2 + $0x140] sm:$0xff] %vm205, 0.0
      %247 = vst.msk [vmem:[#allocation2 + $0x148] sm:$0xff] %vm205, 0.0
      %248 = vst.msk [vmem:[#allocation2 + $0x150] sm:$0xff] %vm205, 0.0
      %249 = vst.msk [vmem:[#allocation2 + $0x158] sm:$0xff] %vm205, 0.0
      %250 = vst.msk [vmem:[#allocation2 + $0x160] sm:$0xff] %vm205, 0.0
      %251 = vst.msk [vmem:[#allocation2 + $0x168] sm:$0xff] %vm205, 0.0
      %252 = vst.msk [vmem:[#allocation2 + $0x170] sm:$0xff] %vm205, 0.0
      %253 = vst.msk [vmem:[#allocation2 + $0x178] sm:$0xff] %vm205, 0.0
      %254 = vst.msk [vmem:[#allocation2 + $0x180] sm:$0xff] %vm205, 0.0
      %255 = vst.msk [vmem:[#allocation2 + $0x188] sm:$0xff] %vm205, 0.0
      %256 = vst.msk [vmem:[#allocation2 + $0x190] sm:$0xff] %vm205, 0.0
      %257 = vst.msk [vmem:[#allocation2 + $0x198] sm:$0xff] %vm205, 0.0
      %258 = vst.msk [vmem:[#allocation2 + $0x1a0] sm:$0xff] %vm205, 0.0
      %259 = vst.msk [vmem:[#allocation2 + $0x1a8] sm:$0xff] %vm205, 0.0
      %260 = vst.msk [vmem:[#allocation2 + $0x1b0] sm:$0xff] %vm205, 0.0
      %261 = vst.msk [vmem:[#allocation2 + $0x1b8] sm:$0xff] %vm205, 0.0
      %262 = vst.msk [vmem:[#allocation2 + $0x1c0] sm:$0xff] %vm205, 0.0
      %263 = vst.msk [vmem:[#allocation2 + $0x1c8] sm:$0xff] %vm205, 0.0
      %264 = vst.msk [vmem:[#allocation2 + $0x1d0] sm:$0xff] %vm205, 0.0
      %265 = vst.msk [vmem:[#allocation2 + $0x1d8] sm:$0xff] %vm205, 0.0
      %266 = vst.msk [vmem:[#allocation2 + $0x1e0] sm:$0xff] %vm205, 0.0
      %267 = vst.msk [vmem:[#allocation2 + $0x1e8] sm:$0xff] %vm205, 0.0
      %268 = vst.msk [vmem:[#allocation2 + $0x1f0] sm:$0xff] %vm205, 0.0
      %269 = vst.msk [vmem:[#allocation2 + $0x1f8] sm:$0xff] %vm205, 0.0
      %270 = vst.msk [vmem:[#allocation2 + $0x200] sm:$0xff] %vm205, 0.0
      %271 = vst.msk [vmem:[#allocation2 + $0x208] sm:$0xff] %vm205, 0.0
      %272 = vst.msk [vmem:[#allocation2 + $0x210] sm:$0xff] %vm205, 0.0
      %273 = vst.msk [vmem:[#allocation2 + $0x218] sm:$0xff] %vm205, 0.0
      %274 = vst.msk [vmem:[#allocation2 + $0x220] sm:$0xff] %vm205, 0.0
      %275 = vst.msk [vmem:[#allocation2 + $0x228] sm:$0xff] %vm205, 0.0
      %276 = vst.msk [vmem:[#allocation2 + $0x230] sm:$0xff] %vm205, 0.0
      %277 = vst.msk [vmem:[#allocation2 + $0x238] sm:$0xff] %vm205, 0.0
      %278 = vst.msk [vmem:[#allocation2 + $0x240] sm:$0xff] %vm205, 0.0
      %279 = vst.msk [vmem:[#allocation2 + $0x248] sm:$0xff] %vm205, 0.0
      %280 = vst.msk [vmem:[#allocation2 + $0x250] sm:$0xff] %vm205, 0.0
      %281 = vst.msk [vmem:[#allocation2 + $0x258] sm:$0xff] %vm205, 0.0
      %282 = vst.msk [vmem:[#allocation2 + $0x260] sm:$0xff] %vm205, 0.0
      %283 = vst.msk [vmem:[#allocation2 + $0x268] sm:$0xff] %vm205, 0.0
      %284 = vst.msk [vmem:[#allocation2 + $0x270] sm:$0xff] %vm205, 0.0
      %285 = vst.msk [vmem:[#allocation2 + $0x278] sm:$0xff] %vm205, 0.0
      %286 = vst.msk [vmem:[#allocation2 + $0x280] sm:$0xff] %vm205, 0.0
      %287 = vst.msk [vmem:[#allocation2 + $0x288] sm:$0xff] %vm205, 0.0
      %288 = vst.msk [vmem:[#allocation2 + $0x290] sm:$0xff] %vm205, 0.0
      %289 = vst.msk [vmem:[#allocation2 + $0x298] sm:$0xff] %vm205, 0.0
      %290 = vst.msk [vmem:[#allocation2 + $0x2a0] sm:$0xff] %vm205, 0.0
      %291 = vst.msk [vmem:[#allocation2 + $0x2a8] sm:$0xff] %vm205, 0.0
      %292 = vst.msk [vmem:[#allocation2 + $0x2b0] sm:$0xff] %vm205, 0.0
      %293 = vst.msk [vmem:[#allocation2 + $0x2b8] sm:$0xff] %vm205, 0.0
      %294 = vst.msk [vmem:[#allocation2 + $0x2c0] sm:$0xff] %vm205, 0.0
      %295 = vst.msk [vmem:[#allocation2 + $0x2c8] sm:$0xff] %vm205, 0.0
      %296 = vst.msk [vmem:[#allocation2 + $0x2d0] sm:$0xff] %vm205, 0.0
      %297 = vst.msk [vmem:[#allocation2 + $0x2d8] sm:$0xff] %vm205, 0.0
      %298 = vst.msk [vmem:[#allocation2 + $0x2e0] sm:$0xff] %vm205, 0.0
      %299 = vst.msk [vmem:[#allocation2 + $0x2e8] sm:$0xff] %vm205, 0.0
      %300 = vst.msk [vmem:[#allocation2 + $0x2f0] sm:$0xff] %vm205, 0.0
      %301 = vst.msk [vmem:[#allocation2 + $0x2f8] sm:$0xff] %vm205, 0.0
      %302 = vst.msk [vmem:[#allocation2 + $0x300] sm:$0xff] %vm205, 0.0
      %303 = vst.msk [vmem:[#allocation2 + $0x308] sm:$0xff] %vm205, 0.0
      %304 = vst.msk [vmem:[#allocation2 + $0x310] sm:$0xff] %vm205, 0.0
      %305 = vst.msk [vmem:[#allocation2 + $0x318] sm:$0xff] %vm205, 0.0
      %306 = vst.msk [vmem:[#allocation2 + $0x320] sm:$0xff] %vm205, 0.0
      %307 = vst.msk [vmem:[#allocation2 + $0x328] sm:$0xff] %vm205, 0.0
      %308 = vst.msk [vmem:[#allocation2 + $0x330] sm:$0xff] %vm205, 0.0
      %309 = vst.msk [vmem:[#allocation2 + $0x338] sm:$0xff] %vm205, 0.0
      %310 = vst.msk [vmem:[#allocation2 + $0x340] sm:$0xff] %vm205, 0.0
      %311 = vst.msk [vmem:[#allocation2 + $0x348] sm:$0xff] %vm205, 0.0
      %312 = vst.msk [vmem:[#allocation2 + $0x350] sm:$0xff] %vm205, 0.0
      %313 = vst.msk [vmem:[#allocation2 + $0x358] sm:$0xff] %vm205, 0.0
      %314 = vst.msk [vmem:[#allocation2 + $0x360] sm:$0xff] %vm205, 0.0
      %315 = vst.msk [vmem:[#allocation2 + $0x368] sm:$0xff] %vm205, 0.0
      %316 = vst.msk [vmem:[#allocation2 + $0x370] sm:$0xff] %vm205, 0.0
      %317 = vst.msk [vmem:[#allocation2 + $0x378] sm:$0xff] %vm205, 0.0
      %318 = vst.msk [vmem:[#allocation2 + $0x380] sm:$0xff] %vm205, 0.0
      %319 = vst.msk [vmem:[#allocation2 + $0x388] sm:$0xff] %vm205, 0.0
      %320 = vst.msk [vmem:[#allocation2 + $0x390] sm:$0xff] %vm205, 0.0
      %321 = vst.msk [vmem:[#allocation2 + $0x398] sm:$0xff] %vm205, 0.0
      %322 = vst.msk [vmem:[#allocation2 + $0x3a0] sm:$0xff] %vm205, 0.0
      %323 = vst.msk [vmem:[#allocation2 + $0x3a8] sm:$0xff] %vm205, 0.0
      %324 = vst.msk [vmem:[#allocation2 + $0x3b0] sm:$0xff] %vm205, 0.0
      %325 = vst.msk [vmem:[#allocation2 + $0x3b8] sm:$0xff] %vm205, 0.0
      %326 = vst.msk [vmem:[#allocation2 + $0x3c0] sm:$0xff] %vm205, 0.0
      %327 = vst.msk [vmem:[#allocation2 + $0x3c8] sm:$0xff] %vm205, 0.0
      %328 = vst.msk [vmem:[#allocation2 + $0x3d0] sm:$0xff] %vm205, 0.0
      %329 = vst.msk [vmem:[#allocation2 + $0x3d8] sm:$0xff] %vm205, 0.0
      %330 = vst.msk [vmem:[#allocation2 + $0x3e0] sm:$0xff] %vm205, 0.0
      %331 = vst.msk [vmem:[#allocation2 + $0x3e8] sm:$0xff] %vm205, 0.0
      %332 = vst.msk [vmem:[#allocation2 + $0x3f0] sm:$0xff] %vm205, 0.0
      %333 = vst.msk [vmem:[#allocation2 + $0x3f8] sm:$0xff] %vm205, 0.0
      %334 = vst.msk [vmem:[#allocation2 + $0x400] sm:$0xff] %vm205, 0.0
      %335 = vst.msk [vmem:[#allocation2 + $0x408] sm:$0xff] %vm205, 0.0
      %336 = vst.msk [vmem:[#allocation2 + $0x410] sm:$0xff] %vm205, 0.0
      %337 = vst.msk [vmem:[#allocation2 + $0x418] sm:$0xff] %vm205, 0.0
      %338 = vst.msk [vmem:[#allocation2 + $0x420] sm:$0xff] %vm205, 0.0
      %339 = vst.msk [vmem:[#allocation2 + $0x428] sm:$0xff] %vm205, 0.0
      %340 = vst.msk [vmem:[#allocation2 + $0x430] sm:$0xff] %vm205, 0.0
      %341 = vst.msk [vmem:[#allocation2 + $0x438] sm:$0xff] %vm205, 0.0
      %342 = vst.msk [vmem:[#allocation2 + $0x440] sm:$0xff] %vm205, 0.0
      %343 = vst.msk [vmem:[#allocation2 + $0x448] sm:$0xff] %vm205, 0.0
      %344 = vst.msk [vmem:[#allocation2 + $0x450] sm:$0xff] %vm205, 0.0
      %345 = vst.msk [vmem:[#allocation2 + $0x458] sm:$0xff] %vm205, 0.0
      %346 = vst.msk [vmem:[#allocation2 + $0x460] sm:$0xff] %vm205, 0.0
      %347 = vst.msk [vmem:[#allocation2 + $0x468] sm:$0xff] %vm205, 0.0
      %348 = vst.msk [vmem:[#allocation2 + $0x470] sm:$0xff] %vm205, 0.0
      %349 = vst.msk [vmem:[#allocation2 + $0x478] sm:$0xff] %vm205, 0.0
      %v350 = vld [vmem:[%s187] sm:$0xff]
      %v351 = vld [vmem:[%s187 + $0x8] sm:$0xff]
      %v352 = vld [vmem:[%s187 + $0x10] sm:$0xff]
      %v353 = vld [vmem:[%s187 + $0x18] sm:$0xff]
      %v354 = vld [vmem:[%s187 + $0x20] sm:$0xff]
      %v355 = vld [vmem:[%s187 + $0x28] sm:$0xff]
      %v356 = vld [vmem:[%s187 + $0x30] sm:$0xff]
      %v357 = vld [vmem:[%s187 + $0x38] sm:$0xff]
      %v358 = vld [vmem:[%s187 + $0x40] sm:$0xff]
      %v359 = vld [vmem:[%s187 + $0x48] sm:$0xff]
      %v360 = vld [vmem:[%s187 + $0x50] sm:$0xff]
      %v361 = vld [vmem:[%s187 + $0x58] sm:$0xff]
      %v362 = vld [vmem:[%s187 + $0x60] sm:$0xff]
      %v363 = vld [vmem:[%s187 + $0x68] sm:$0xff]
      %v364 = vld [vmem:[%s187 + $0x70] sm:$0xff]
      %v365 = vld [vmem:[%s187 + $0x78] sm:$0xff]
      %v366 = vld [vmem:[%s187 + $0x80] sm:$0xff]
      %v367 = vld [vmem:[%s187 + $0x88] sm:$0xff]
      %v368 = vld [vmem:[%s187 + $0x90] sm:$0xff]
      %v369 = vld [vmem:[%s187 + $0x98] sm:$0xff]
      %v370 = vld [vmem:[%s187 + $0xa0] sm:$0xff]
      %v371 = vld [vmem:[%s187 + $0xa8] sm:$0xff]
      %v372 = vld [vmem:[%s187 + $0xb0] sm:$0xff]
      %v373 = vld [vmem:[%s187 + $0xb8] sm:$0xff]
      %v374 = vld [vmem:[%s187 + $0xc0] sm:$0xff]
      %v375 = vld [vmem:[%s187 + $0xc8] sm:$0xff]
      %v376 = vld [vmem:[%s187 + $0xd0] sm:$0xff]
      %v377 = vld [vmem:[%s187 + $0xd8] sm:$0xff]
      %v378 = vld [vmem:[%s187 + $0xe0] sm:$0xff]
      %v379 = vld [vmem:[%s187 + $0xe8] sm:$0xff]
      %v380 = vld [vmem:[%s187 + $0xf0] sm:$0xff]
      %v381 = vld [vmem:[%s187 + $0xf8] sm:$0xff]
      %v382 = vld [vmem:[%s187 + $0x100] sm:$0xff]
      %v383 = vld [vmem:[%s187 + $0x108] sm:$0xff]
      %v384 = vld [vmem:[%s187 + $0x110] sm:$0xff]
      %v385 = vld [vmem:[%s187 + $0x118] sm:$0xff]
      %v386 = vld [vmem:[%s187 + $0x120] sm:$0xff]
      %v387 = vld [vmem:[%s187 + $0x128] sm:$0xff]
      %v388 = vld [vmem:[%s187 + $0x130] sm:$0xff]
      %v389 = vld [vmem:[%s187 + $0x138] sm:$0xff]
      %v390 = vld [vmem:[%s187 + $0x140] sm:$0xff]
      %v391 = vld [vmem:[%s187 + $0x148] sm:$0xff]
      %v392 = vld [vmem:[%s187 + $0x150] sm:$0xff]
      %v393 = vld [vmem:[%s187 + $0x158] sm:$0xff]
      %v394 = vld [vmem:[%s187 + $0x160] sm:$0xff]
      %v395 = vld [vmem:[%s187 + $0x168] sm:$0xff]
      %v396 = vld [vmem:[%s187 + $0x170] sm:$0xff]
      %v397 = vld [vmem:[%s187 + $0x178] sm:$0xff]
      %v398 = vld [vmem:[%s187 + $0x180] sm:$0xff]
      %v399 = vld [vmem:[%s187 + $0x188] sm:$0xff]
      %v400 = vld [vmem:[%s187 + $0x190] sm:$0xff]
      %v401 = vld [vmem:[%s187 + $0x198] sm:$0xff]
      %v402 = vld [vmem:[%s187 + $0x1a0] sm:$0xff]
      %v403 = vld [vmem:[%s187 + $0x1a8] sm:$0xff]
      %v404 = vld [vmem:[%s187 + $0x1b0] sm:$0xff]
      %v405 = vld [vmem:[%s187 + $0x1b8] sm:$0xff]
      %v406 = vld [vmem:[%s187 + $0x1c0] sm:$0xff]
      %v407 = vld [vmem:[%s187 + $0x1c8] sm:$0xff]
      %v408 = vld [vmem:[%s187 + $0x1d0] sm:$0xff]
      %v409 = vld [vmem:[%s187 + $0x1d8] sm:$0xff]
      %v410 = vld [vmem:[%s187 + $0x1e0] sm:$0xff]
      %v411 = vld [vmem:[%s187 + $0x1e8] sm:$0xff]
      %v412 = vld [vmem:[%s187 + $0x1f0] sm:$0xff]
      %v413 = vld [vmem:[%s187 + $0x1f8] sm:$0xff]
      %v414 = vld [vmem:[%s187 + $0x200] sm:$0xff]
      %v415 = vld [vmem:[%s187 + $0x208] sm:$0xff]
      %v416 = vld [vmem:[%s187 + $0x210] sm:$0xff]
      %v417 = vld [vmem:[%s187 + $0x218] sm:$0xff]
      %v418 = vld [vmem:[%s187 + $0x220] sm:$0xff]
      %v419 = vld [vmem:[%s187 + $0x228] sm:$0xff]
      %v420 = vld [vmem:[%s187 + $0x230] sm:$0xff]
      %v421 = vld [vmem:[%s187 + $0x238] sm:$0xff]
      %v422 = vld [vmem:[%s187 + $0x240] sm:$0xff]
      %v423 = vld [vmem:[%s187 + $0x248] sm:$0xff]
      %v424 = vld [vmem:[%s187 + $0x250] sm:$0xff]
      %v425 = vld [vmem:[%s187 + $0x258] sm:$0xff]
      %v426 = vld [vmem:[%s187 + $0x260] sm:$0xff]
      %v427 = vld [vmem:[%s187 + $0x268] sm:$0xff]
      %v428 = vld [vmem:[%s187 + $0x270] sm:$0xff]
      %v429 = vld [vmem:[%s187 + $0x278] sm:$0xff]
      %v430 = vld [vmem:[%s187 + $0x280] sm:$0xff]
      %v431 = vld [vmem:[%s187 + $0x288] sm:$0xff]
      %v432 = vld [vmem:[%s187 + $0x290] sm:$0xff]
      %v433 = vld [vmem:[%s187 + $0x298] sm:$0xff]
      %v434 = vld [vmem:[%s187 + $0x2a0] sm:$0xff]
      %v435 = vld [vmem:[%s187 + $0x2a8] sm:$0xff]
      %v436 = vld [vmem:[%s187 + $0x2b0] sm:$0xff]
      %v437 = vld [vmem:[%s187 + $0x2b8] sm:$0xff]
      %v438 = vld [vmem:[%s187 + $0x2c0] sm:$0xff]
      %v439 = vld [vmem:[%s187 + $0x2c8] sm:$0xff]
      %v440 = vld [vmem:[%s187 + $0x2d0] sm:$0xff]
      %v441 = vld [vmem:[%s187 + $0x2d8] sm:$0xff]
      %v442 = vld [vmem:[%s187 + $0x2e0] sm:$0xff]
      %v443 = vld [vmem:[%s187 + $0x2e8] sm:$0xff]
      %v444 = vld [vmem:[%s187 + $0x2f0] sm:$0xff]
      %v445 = vld [vmem:[%s187 + $0x2f8] sm:$0xff]
      %v446 = vld [vmem:[%s187 + $0x300] sm:$0xff]
      %v447 = vld [vmem:[%s187 + $0x308] sm:$0xff]
      %v448 = vld [vmem:[%s187 + $0x310] sm:$0xff]
      %v449 = vld [vmem:[%s187 + $0x318] sm:$0xff]
      %v450 = vld [vmem:[%s187 + $0x320] sm:$0xff]
      %v451 = vld [vmem:[%s187 + $0x328] sm:$0xff]
      %v452 = vld [vmem:[%s187 + $0x330] sm:$0xff]
      %v453 = vld [vmem:[%s187 + $0x338] sm:$0xff]
      %v454 = vld [vmem:[%s187 + $0x340] sm:$0xff]
      %v455 = vld [vmem:[%s187 + $0x348] sm:$0xff]
      %v456 = vld [vmem:[%s187 + $0x350] sm:$0xff]
      %v457 = vld [vmem:[%s187 + $0x358] sm:$0xff]
      %v458 = vld [vmem:[%s187 + $0x360] sm:$0xff]
      %v459 = vld [vmem:[%s187 + $0x368] sm:$0xff]
      %v460 = vld [vmem:[%s187 + $0x370] sm:$0xff]
      %v461 = vld [vmem:[%s187 + $0x378] sm:$0xff]
      %v462 = vld [vmem:[%s187 + $0x380] sm:$0xff]
      %v463 = vld [vmem:[%s187 + $0x388] sm:$0xff]
      %v464 = vld [vmem:[%s187 + $0x390] sm:$0xff]
      %v465 = vld [vmem:[%s187 + $0x398] sm:$0xff]
      %v466 = vld [vmem:[%s187 + $0x3a0] sm:$0xff]
      %v467 = vld [vmem:[%s187 + $0x3a8] sm:$0xff]
      %v468 = vld [vmem:[%s187 + $0x3b0] sm:$0xff]
      %v469 = vld [vmem:[%s187 + $0x3b8] sm:$0xff]
      %v470 = vld [vmem:[%s187 + $0x3c0] sm:$0xff]
      %v471 = vld [vmem:[%s187 + $0x3c8] sm:$0xff]
      %v472 = vld [vmem:[%s187 + $0x3d0] sm:$0xff]
      %v473 = vld [vmem:[%s187 + $0x3d8] sm:$0xff]
      %v474 = vld [vmem:[%s187 + $0x3e0] sm:$0xff]
      %v475 = vld [vmem:[%s187 + $0x3e8] sm:$0xff]
      %v476 = vld [vmem:[%s187 + $0x3f0] sm:$0xff]
      %v477 = vld [vmem:[%s187 + $0x3f8] sm:$0xff]
      %v478 = vld [vmem:[%s187 + $0x400] sm:$0xff]
      %v479 = vld [vmem:[%s187 + $0x408] sm:$0xff]
      %v480 = vld [vmem:[%s187 + $0x410] sm:$0xff]
      %v481 = vld [vmem:[%s187 + $0x418] sm:$0xff]
      %v482 = vld [vmem:[%s187 + $0x420] sm:$0xff]
      %v483 = vld [vmem:[%s187 + $0x428] sm:$0xff]
      %v484 = vld [vmem:[%s187 + $0x430] sm:$0xff]
      %v485 = vld [vmem:[%s187 + $0x438] sm:$0xff]
      %v486 = vld [vmem:[%s187 + $0x440] sm:$0xff]
      %v487 = vld [vmem:[%s187 + $0x448] sm:$0xff]
      %v488 = vld [vmem:[%s187 + $0x450] sm:$0xff]
      %v489 = vld [vmem:[%s187 + $0x458] sm:$0xff]
      %v490 = vld [vmem:[%s187 + $0x460] sm:$0xff]
      %v491 = vld [vmem:[%s187 + $0x468] sm:$0xff]
      %v492 = vld [vmem:[%s187 + $0x470] sm:$0xff]
      %v493 = vld [vmem:[%s187 + $0x478] sm:$0xff]
      %638 = vrot.lane.b32.xlu0 %v350, 16
      %v639 = vpop.permute.xlu0 %638
      %640 = vrot.lane.b32.xlu0 %v351, 16
      %v641 = vpop.permute.xlu0 %640
      %642 = vrot.lane.b32.xlu0 %v352, 16
      %v643 = vpop.permute.xlu0 %642
      %644 = vrot.lane.b32.xlu0 %v353, 16
      %v645 = vpop.permute.xlu0 %644
      %646 = vrot.lane.b32.xlu0 %v354, 16
      %v647 = vpop.permute.xlu0 %646
      %648 = vrot.lane.b32.xlu0 %v355, 16
      %v649 = vpop.permute.xlu0 %648
      %650 = vrot.lane.b32.xlu0 %v356, 16
      %v651 = vpop.permute.xlu0 %650
      %652 = vrot.lane.b32.xlu0 %v357, 16
      %v653 = vpop.permute.xlu0 %652
      %654 = vrot.lane.b32.xlu0 %v358, 16
      %v655 = vpop.permute.xlu0 %654
      %656 = vrot.lane.b32.xlu0 %v359, 16
      %v657 = vpop.permute.xlu0 %656
      %658 = vrot.lane.b32.xlu0 %v360, 16
      %v659 = vpop.permute.xlu0 %658
      %660 = vrot.lane.b32.xlu0 %v361, 16
      %v661 = vpop.permute.xlu0 %660
      %662 = vrot.lane.b32.xlu0 %v362, 16
      %v663 = vpop.permute.xlu0 %662
      %664 = vrot.lane.b32.xlu0 %v363, 16
      %v665 = vpop.permute.xlu0 %664
      %666 = vrot.lane.b32.xlu0 %v364, 16
      %v667 = vpop.permute.xlu0 %666
      %668 = vrot.lane.b32.xlu0 %v365, 16
      %v669 = vpop.permute.xlu0 %668
      %670 = vrot.lane.b32.xlu0 %v366, 16
      %v671 = vpop.permute.xlu0 %670
      %672 = vrot.lane.b32.xlu0 %v367, 16
      %v673 = vpop.permute.xlu0 %672
      %674 = vrot.lane.b32.xlu0 %v368, 16
      %v675 = vpop.permute.xlu0 %674
      %676 = vrot.lane.b32.xlu0 %v369, 16
      %v677 = vpop.permute.xlu0 %676
      %678 = vrot.lane.b32.xlu0 %v370, 16
      %v679 = vpop.permute.xlu0 %678
      %680 = vrot.lane.b32.xlu0 %v371, 16
      %v681 = vpop.permute.xlu0 %680
      %682 = vrot.lane.b32.xlu0 %v372, 16
      %v683 = vpop.permute.xlu0 %682
      %684 = vrot.lane.b32.xlu0 %v373, 16
      %v685 = vpop.permute.xlu0 %684
      %686 = vrot.lane.b32.xlu0 %v374, 16
      %v687 = vpop.permute.xlu0 %686
      %688 = vrot.lane.b32.xlu0 %v375, 16
      %v689 = vpop.permute.xlu0 %688
      %690 = vrot.lane.b32.xlu0 %v376, 16
      %v691 = vpop.permute.xlu0 %690
      %692 = vrot.lane.b32.xlu0 %v377, 16
      %v693 = vpop.permute.xlu0 %692
      %694 = vrot.lane.b32.xlu0 %v378, 16
      %v695 = vpop.permute.xlu0 %694
      %696 = vrot.lane.b32.xlu0 %v379, 16
      %v697 = vpop.permute.xlu0 %696
      %698 = vrot.lane.b32.xlu0 %v380, 16
      %v699 = vpop.permute.xlu0 %698
      %700 = vrot.lane.b32.xlu0 %v381, 16
      %v701 = vpop.permute.xlu0 %700
      %702 = vrot.lane.b32.xlu0 %v382, 16
      %v703 = vpop.permute.xlu0 %702
      %704 = vrot.lane.b32.xlu0 %v383, 16
      %v705 = vpop.permute.xlu0 %704
      %706 = vrot.lane.b32.xlu0 %v384, 16
      %v707 = vpop.permute.xlu0 %706
      %708 = vrot.lane.b32.xlu0 %v385, 16
      %v709 = vpop.permute.xlu0 %708
      %710 = vrot.lane.b32.xlu0 %v386, 16
      %v711 = vpop.permute.xlu0 %710
      %712 = vrot.lane.b32.xlu0 %v387, 16
      %v713 = vpop.permute.xlu0 %712
      %714 = vrot.lane.b32.xlu0 %v388, 16
      %v715 = vpop.permute.xlu0 %714
      %716 = vrot.lane.b32.xlu0 %v389, 16
      %v717 = vpop.permute.xlu0 %716
      %718 = vrot.lane.b32.xlu0 %v390, 16
      %v719 = vpop.permute.xlu0 %718
      %720 = vrot.lane.b32.xlu0 %v391, 16
      %v721 = vpop.permute.xlu0 %720
      %722 = vrot.lane.b32.xlu0 %v392, 16
      %v723 = vpop.permute.xlu0 %722
      %724 = vrot.lane.b32.xlu0 %v393, 16
      %v725 = vpop.permute.xlu0 %724
      %726 = vrot.lane.b32.xlu0 %v394, 16
      %v727 = vpop.permute.xlu0 %726
      %728 = vrot.lane.b32.xlu0 %v395, 16
      %v729 = vpop.permute.xlu0 %728
      %730 = vrot.lane.b32.xlu0 %v396, 16
      %v731 = vpop.permute.xlu0 %730
      %732 = vrot.lane.b32.xlu0 %v397, 16
      %v733 = vpop.permute.xlu0 %732
      %734 = vrot.lane.b32.xlu0 %v398, 16
      %v735 = vpop.permute.xlu0 %734
      %736 = vrot.lane.b32.xlu0 %v399, 16
      %v737 = vpop.permute.xlu0 %736
      %738 = vrot.lane.b32.xlu0 %v400, 16
      %v739 = vpop.permute.xlu0 %738
      %740 = vrot.lane.b32.xlu0 %v401, 16
      %v741 = vpop.permute.xlu0 %740
      %742 = vrot.lane.b32.xlu0 %v402, 16
      %v743 = vpop.permute.xlu0 %742
      %744 = vrot.lane.b32.xlu0 %v403, 16
      %v745 = vpop.permute.xlu0 %744
      %746 = vrot.lane.b32.xlu0 %v404, 16
      %v747 = vpop.permute.xlu0 %746
      %748 = vrot.lane.b32.xlu0 %v405, 16
      %v749 = vpop.permute.xlu0 %748
      %750 = vrot.lane.b32.xlu0 %v406, 16
      %v751 = vpop.permute.xlu0 %750
      %752 = vrot.lane.b32.xlu0 %v407, 16
      %v753 = vpop.permute.xlu0 %752
      %754 = vrot.lane.b32.xlu0 %v408, 16
      %v755 = vpop.permute.xlu0 %754
      %756 = vrot.lane.b32.xlu0 %v409, 16
      %v757 = vpop.permute.xlu0 %756
      %758 = vrot.lane.b32.xlu0 %v410, 16
      %v759 = vpop.permute.xlu0 %758
      %760 = vrot.lane.b32.xlu0 %v411, 16
      %v761 = vpop.permute.xlu0 %760
      %762 = vrot.lane.b32.xlu0 %v412, 16
      %v763 = vpop.permute.xlu0 %762
      %764 = vrot.lane.b32.xlu0 %v413, 16
      %v765 = vpop.permute.xlu0 %764
      %766 = vrot.lane.b32.xlu0 %v414, 16
      %v767 = vpop.permute.xlu0 %766
      %768 = vrot.lane.b32.xlu0 %v415, 16
      %v769 = vpop.permute.xlu0 %768
      %770 = vrot.lane.b32.xlu0 %v416, 16
      %v771 = vpop.permute.xlu0 %770
      %772 = vrot.lane.b32.xlu0 %v417, 16
      %v773 = vpop.permute.xlu0 %772
      %774 = vrot.lane.b32.xlu0 %v418, 16
      %v775 = vpop.permute.xlu0 %774
      %776 = vrot.lane.b32.xlu0 %v419, 16
      %v777 = vpop.permute.xlu0 %776
      %778 = vrot.lane.b32.xlu0 %v420, 16
      %v779 = vpop.permute.xlu0 %778
      %780 = vrot.lane.b32.xlu0 %v421, 16
      %v781 = vpop.permute.xlu0 %780
      %782 = vrot.lane.b32.xlu0 %v422, 16
      %v783 = vpop.permute.xlu0 %782
      %784 = vrot.lane.b32.xlu0 %v423, 16
      %v785 = vpop.permute.xlu0 %784
      %786 = vrot.lane.b32.xlu0 %v424, 16
      %v787 = vpop.permute.xlu0 %786
      %788 = vrot.lane.b32.xlu0 %v425, 16
      %v789 = vpop.permute.xlu0 %788
      %790 = vrot.lane.b32.xlu0 %v426, 16
      %v791 = vpop.permute.xlu0 %790
      %792 = vrot.lane.b32.xlu0 %v427, 16
      %v793 = vpop.permute.xlu0 %792
      %794 = vrot.lane.b32.xlu0 %v428, 16
      %v795 = vpop.permute.xlu0 %794
      %796 = vrot.lane.b32.xlu0 %v429, 16
      %v797 = vpop.permute.xlu0 %796
      %798 = vrot.lane.b32.xlu0 %v430, 16
      %v799 = vpop.permute.xlu0 %798
      %800 = vrot.lane.b32.xlu0 %v431, 16
      %v801 = vpop.permute.xlu0 %800
      %802 = vrot.lane.b32.xlu0 %v432, 16
      %v803 = vpop.permute.xlu0 %802
      %804 = vrot.lane.b32.xlu0 %v433, 16
      %v805 = vpop.permute.xlu0 %804
      %806 = vrot.lane.b32.xlu0 %v434, 16
      %v807 = vpop.permute.xlu0 %806
      %808 = vrot.lane.b32.xlu0 %v435, 16
      %v809 = vpop.permute.xlu0 %808
      %810 = vrot.lane.b32.xlu0 %v436, 16
      %v811 = vpop.permute.xlu0 %810
      %812 = vrot.lane.b32.xlu0 %v437, 16
      %v813 = vpop.permute.xlu0 %812
      %814 = vrot.lane.b32.xlu0 %v438, 16
      %v815 = vpop.permute.xlu0 %814
      %816 = vrot.lane.b32.xlu0 %v439, 16
      %v817 = vpop.permute.xlu0 %816
      %818 = vrot.lane.b32.xlu0 %v440, 16
      %v819 = vpop.permute.xlu0 %818
      %820 = vrot.lane.b32.xlu0 %v441, 16
      %v821 = vpop.permute.xlu0 %820
      %822 = vrot.lane.b32.xlu0 %v442, 16
      %v823 = vpop.permute.xlu0 %822
      %824 = vrot.lane.b32.xlu0 %v443, 16
      %v825 = vpop.permute.xlu0 %824
      %826 = vrot.lane.b32.xlu0 %v444, 16
      %v827 = vpop.permute.xlu0 %826
      %828 = vrot.lane.b32.xlu0 %v445, 16
      %v829 = vpop.permute.xlu0 %828
      %830 = vrot.lane.b32.xlu0 %v446, 16
      %v831 = vpop.permute.xlu0 %830
      %832 = vrot.lane.b32.xlu0 %v447, 16
      %v833 = vpop.permute.xlu0 %832
      %834 = vrot.lane.b32.xlu0 %v448, 16
      %v835 = vpop.permute.xlu0 %834
      %836 = vrot.lane.b32.xlu0 %v449, 16
      %v837 = vpop.permute.xlu0 %836
      %838 = vrot.lane.b32.xlu0 %v450, 16
      %v839 = vpop.permute.xlu0 %838
      %840 = vrot.lane.b32.xlu0 %v451, 16
      %v841 = vpop.permute.xlu0 %840
      %842 = vrot.lane.b32.xlu0 %v452, 16
      %v843 = vpop.permute.xlu0 %842
      %844 = vrot.lane.b32.xlu0 %v453, 16
      %v845 = vpop.permute.xlu0 %844
      %846 = vrot.lane.b32.xlu0 %v454, 16
      %v847 = vpop.permute.xlu0 %846
      %848 = vrot.lane.b32.xlu0 %v455, 16
      %v849 = vpop.permute.xlu0 %848
      %850 = vrot.lane.b32.xlu0 %v456, 16
      %v851 = vpop.permute.xlu0 %850
      %852 = vrot.lane.b32.xlu0 %v457, 16
      %v853 = vpop.permute.xlu0 %852
      %854 = vrot.lane.b32.xlu0 %v458, 16
      %v855 = vpop.permute.xlu0 %854
      %856 = vrot.lane.b32.xlu0 %v459, 16
      %v857 = vpop.permute.xlu0 %856
      %858 = vrot.lane.b32.xlu0 %v460, 16
      %v859 = vpop.permute.xlu0 %858
      %860 = vrot.lane.b32.xlu0 %v461, 16
      %v861 = vpop.permute.xlu0 %860
      %862 = vrot.lane.b32.xlu0 %v462, 16
      %v863 = vpop.permute.xlu0 %862
      %864 = vrot.lane.b32.xlu0 %v463, 16
      %v865 = vpop.permute.xlu0 %864
      %866 = vrot.lane.b32.xlu0 %v464, 16
      %v867 = vpop.permute.xlu0 %866
      %868 = vrot.lane.b32.xlu0 %v465, 16
      %v869 = vpop.permute.xlu0 %868
      %870 = vrot.lane.b32.xlu0 %v466, 16
      %v871 = vpop.permute.xlu0 %870
      %872 = vrot.lane.b32.xlu0 %v467, 16
      %v873 = vpop.permute.xlu0 %872
      %874 = vrot.lane.b32.xlu0 %v468, 16
      %v875 = vpop.permute.xlu0 %874
      %876 = vrot.lane.b32.xlu0 %v469, 16
      %v877 = vpop.permute.xlu0 %876
      %878 = vrot.lane.b32.xlu0 %v470, 16
      %v879 = vpop.permute.xlu0 %878
      %880 = vrot.lane.b32.xlu0 %v471, 16
      %v881 = vpop.permute.xlu0 %880
      %882 = vrot.lane.b32.xlu0 %v472, 16
      %v883 = vpop.permute.xlu0 %882
      %884 = vrot.lane.b32.xlu0 %v473, 16
      %v885 = vpop.permute.xlu0 %884
      %886 = vrot.lane.b32.xlu0 %v474, 16
      %v887 = vpop.permute.xlu0 %886
      %888 = vrot.lane.b32.xlu0 %v475, 16
      %v889 = vpop.permute.xlu0 %888
      %890 = vrot.lane.b32.xlu0 %v476, 16
      %v891 = vpop.permute.xlu0 %890
      %892 = vrot.lane.b32.xlu0 %v477, 16
      %v893 = vpop.permute.xlu0 %892
      %894 = vrot.lane.b32.xlu0 %v478, 16
      %v895 = vpop.permute.xlu0 %894
      %896 = vrot.lane.b32.xlu0 %v479, 16
      %v897 = vpop.permute.xlu0 %896
      %898 = vrot.lane.b32.xlu0 %v480, 16
      %v899 = vpop.permute.xlu0 %898
      %900 = vrot.lane.b32.xlu0 %v481, 16
      %v901 = vpop.permute.xlu0 %900
      %902 = vrot.lane.b32.xlu0 %v482, 16
      %v903 = vpop.permute.xlu0 %902
      %904 = vrot.lane.b32.xlu0 %v483, 16
      %v905 = vpop.permute.xlu0 %904
      %906 = vrot.lane.b32.xlu0 %v484, 16
      %v907 = vpop.permute.xlu0 %906
      %908 = vrot.lane.b32.xlu0 %v485, 16
      %v909 = vpop.permute.xlu0 %908
      %910 = vrot.lane.b32.xlu0 %v486, 16
      %v911 = vpop.permute.xlu0 %910
      %912 = vrot.lane.b32.xlu0 %v487, 16
      %v913 = vpop.permute.xlu0 %912
      %914 = vrot.lane.b32.xlu0 %v488, 16
      %v915 = vpop.permute.xlu0 %914
      %916 = vrot.lane.b32.xlu0 %v489, 16
      %v917 = vpop.permute.xlu0 %916
      %918 = vrot.lane.b32.xlu0 %v490, 16
      %v919 = vpop.permute.xlu0 %918
      %920 = vrot.lane.b32.xlu0 %v491, 16
      %v921 = vpop.permute.xlu0 %920
      %922 = vrot.lane.b32.xlu0 %v492, 16
      %v923 = vpop.permute.xlu0 %922
      %924 = vrot.lane.b32.xlu0 %v493, 16
      %v925 = vpop.permute.xlu0 %924
      %vm1070 = vcmask 531584
      %1071 = vst.msk [vmem:[#allocation2] sm:$0xff] %vm1070, %v639
      %1072 = vst.msk [vmem:[#allocation2 + $0x8] sm:$0xff] %vm1070, %v641
      %1073 = vst.msk [vmem:[#allocation2 + $0x10] sm:$0xff] %vm1070, %v643
      %1074 = vst.msk [vmem:[#allocation2 + $0x18] sm:$0xff] %vm1070, %v645
      %1075 = vst.msk [vmem:[#allocation2 + $0x20] sm:$0xff] %vm1070, %v647
      %1076 = vst.msk [vmem:[#allocation2 + $0x28] sm:$0xff] %vm1070, %v649
      %1077 = vst.msk [vmem:[#allocation2 + $0x30] sm:$0xff] %vm1070, %v651
      %1078 = vst.msk [vmem:[#allocation2 + $0x38] sm:$0xff] %vm1070, %v653
      %1079 = vst.msk [vmem:[#allocation2 + $0x40] sm:$0xff] %vm1070, %v655
      %1080 = vst.msk [vmem:[#allocation2 + $0x48] sm:$0xff] %vm1070, %v657
      %1081 = vst.msk [vmem:[#allocation2 + $0x50] sm:$0xff] %vm1070, %v659
      %1082 = vst.msk [vmem:[#allocation2 + $0x58] sm:$0xff] %vm1070, %v661
      %1083 = vst.msk [vmem:[#allocation2 + $0x60] sm:$0xff] %vm1070, %v663
      %1084 = vst.msk [vmem:[#allocation2 + $0x68] sm:$0xff] %vm1070, %v665
      %1085 = vst.msk [vmem:[#allocation2 + $0x70] sm:$0xff] %vm1070, %v667
      %1086 = vst.msk [vmem:[#allocation2 + $0x78] sm:$0xff] %vm1070, %v669
      %1087 = vst.msk [vmem:[#allocation2 + $0x80] sm:$0xff] %vm1070, %v671
      %1088 = vst.msk [vmem:[#allocation2 + $0x88] sm:$0xff] %vm1070, %v673
      %1089 = vst.msk [vmem:[#allocation2 + $0x90] sm:$0xff] %vm1070, %v675
      %1090 = vst.msk [vmem:[#allocation2 + $0x98] sm:$0xff] %vm1070, %v677
      %1091 = vst.msk [vmem:[#allocation2 + $0xa0] sm:$0xff] %vm1070, %v679
      %1092 = vst.msk [vmem:[#allocation2 + $0xa8] sm:$0xff] %vm1070, %v681
      %1093 = vst.msk [vmem:[#allocation2 + $0xb0] sm:$0xff] %vm1070, %v683
      %1094 = vst.msk [vmem:[#allocation2 + $0xb8] sm:$0xff] %vm1070, %v685
      %1095 = vst.msk [vmem:[#allocation2 + $0xc0] sm:$0xff] %vm1070, %v687
      %1096 = vst.msk [vmem:[#allocation2 + $0xc8] sm:$0xff] %vm1070, %v689
      %1097 = vst.msk [vmem:[#allocation2 + $0xd0] sm:$0xff] %vm1070, %v691
      %1098 = vst.msk [vmem:[#allocation2 + $0xd8] sm:$0xff] %vm1070, %v693
      %1099 = vst.msk [vmem:[#allocation2 + $0xe0] sm:$0xff] %vm1070, %v695
      %1100 = vst.msk [vmem:[#allocation2 + $0xe8] sm:$0xff] %vm1070, %v697
      %1101 = vst.msk [vmem:[#allocation2 + $0xf0] sm:$0xff] %vm1070, %v699
      %1102 = vst.msk [vmem:[#allocation2 + $0xf8] sm:$0xff] %vm1070, %v701
      %1103 = vst.msk [vmem:[#allocation2 + $0x100] sm:$0xff] %vm1070, %v703
      %1104 = vst.msk [vmem:[#allocation2 + $0x108] sm:$0xff] %vm1070, %v705
      %1105 = vst.msk [vmem:[#allocation2 + $0x110] sm:$0xff] %vm1070, %v707
      %1106 = vst.msk [vmem:[#allocation2 + $0x118] sm:$0xff] %vm1070, %v709
      %1107 = vst.msk [vmem:[#allocation2 + $0x120] sm:$0xff] %vm1070, %v711
      %1108 = vst.msk [vmem:[#allocation2 + $0x128] sm:$0xff] %vm1070, %v713
      %1109 = vst.msk [vmem:[#allocation2 + $0x130] sm:$0xff] %vm1070, %v715
      %1110 = vst.msk [vmem:[#allocation2 + $0x138] sm:$0xff] %vm1070, %v717
      %1111 = vst.msk [vmem:[#allocation2 + $0x140] sm:$0xff] %vm1070, %v719
      %1112 = vst.msk [vmem:[#allocation2 + $0x148] sm:$0xff] %vm1070, %v721
      %1113 = vst.msk [vmem:[#allocation2 + $0x150] sm:$0xff] %vm1070, %v723
      %1114 = vst.msk [vmem:[#allocation2 + $0x158] sm:$0xff] %vm1070, %v725
      %1115 = vst.msk [vmem:[#allocation2 + $0x160] sm:$0xff] %vm1070, %v727
      %1116 = vst.msk [vmem:[#allocation2 + $0x168] sm:$0xff] %vm1070, %v729
      %1117 = vst.msk [vmem:[#allocation2 + $0x170] sm:$0xff] %vm1070, %v731
      %1118 = vst.msk [vmem:[#allocation2 + $0x178] sm:$0xff] %vm1070, %v733
      %1119 = vst.msk [vmem:[#allocation2 + $0x180] sm:$0xff] %vm1070, %v735
      %1120 = vst.msk [vmem:[#allocation2 + $0x188] sm:$0xff] %vm1070, %v737
      %1121 = vst.msk [vmem:[#allocation2 + $0x190] sm:$0xff] %vm1070, %v739
      %1122 = vst.msk [vmem:[#allocation2 + $0x198] sm:$0xff] %vm1070, %v741
      %1123 = vst.msk [vmem:[#allocation2 + $0x1a0] sm:$0xff] %vm1070, %v743
      %1124 = vst.msk [vmem:[#allocation2 + $0x1a8] sm:$0xff] %vm1070, %v745
      %1125 = vst.msk [vmem:[#allocation2 + $0x1b0] sm:$0xff] %vm1070, %v747
      %1126 = vst.msk [vmem:[#allocation2 + $0x1b8] sm:$0xff] %vm1070, %v749
      %1127 = vst.msk [vmem:[#allocation2 + $0x1c0] sm:$0xff] %vm1070, %v751
      %1128 = vst.msk [vmem:[#allocation2 + $0x1c8] sm:$0xff] %vm1070, %v753
      %1129 = vst.msk [vmem:[#allocation2 + $0x1d0] sm:$0xff] %vm1070, %v755
      %1130 = vst.msk [vmem:[#allocation2 + $0x1d8] sm:$0xff] %vm1070, %v757
      %1131 = vst.msk [vmem:[#allocation2 + $0x1e0] sm:$0xff] %vm1070, %v759
      %1132 = vst.msk [vmem:[#allocation2 + $0x1e8] sm:$0xff] %vm1070, %v761
      %1133 = vst.msk [vmem:[#allocation2 + $0x1f0] sm:$0xff] %vm1070, %v763
      %1134 = vst.msk [vmem:[#allocation2 + $0x1f8] sm:$0xff] %vm1070, %v765
      %1135 = vst.msk [vmem:[#allocation2 + $0x200] sm:$0xff] %vm1070, %v767
      %1136 = vst.msk [vmem:[#allocation2 + $0x208] sm:$0xff] %vm1070, %v769
      %1137 = vst.msk [vmem:[#allocation2 + $0x210] sm:$0xff] %vm1070, %v771
      %1138 = vst.msk [vmem:[#allocation2 + $0x218] sm:$0xff] %vm1070, %v773
      %1139 = vst.msk [vmem:[#allocation2 + $0x220] sm:$0xff] %vm1070, %v775
      %1140 = vst.msk [vmem:[#allocation2 + $0x228] sm:$0xff] %vm1070, %v777
      %1141 = vst.msk [vmem:[#allocation2 + $0x230] sm:$0xff] %vm1070, %v779
      %1142 = vst.msk [vmem:[#allocation2 + $0x238] sm:$0xff] %vm1070, %v781
      %1143 = vst.msk [vmem:[#allocation2 + $0x240] sm:$0xff] %vm1070, %v783
      %1144 = vst.msk [vmem:[#allocation2 + $0x248] sm:$0xff] %vm1070, %v785
      %1145 = vst.msk [vmem:[#allocation2 + $0x250] sm:$0xff] %vm1070, %v787
      %1146 = vst.msk [vmem:[#allocation2 + $0x258] sm:$0xff] %vm1070, %v789
      %1147 = vst.msk [vmem:[#allocation2 + $0x260] sm:$0xff] %vm1070, %v791
      %1148 = vst.msk [vmem:[#allocation2 + $0x268] sm:$0xff] %vm1070, %v793
      %1149 = vst.msk [vmem:[#allocation2 + $0x270] sm:$0xff] %vm1070, %v795
      %1150 = vst.msk [vmem:[#allocation2 + $0x278] sm:$0xff] %vm1070, %v797
      %1151 = vst.msk [vmem:[#allocation2 + $0x280] sm:$0xff] %vm1070, %v799
      %1152 = vst.msk [vmem:[#allocation2 + $0x288] sm:$0xff] %vm1070, %v801
      %1153 = vst.msk [vmem:[#allocation2 + $0x290] sm:$0xff] %vm1070, %v803
      %1154 = vst.msk [vmem:[#allocation2 + $0x298] sm:$0xff] %vm1070, %v805
      %1155 = vst.msk [vmem:[#allocation2 + $0x2a0] sm:$0xff] %vm1070, %v807
      %1156 = vst.msk [vmem:[#allocation2 + $0x2a8] sm:$0xff] %vm1070, %v809
      %1157 = vst.msk [vmem:[#allocation2 + $0x2b0] sm:$0xff] %vm1070, %v811
      %1158 = vst.msk [vmem:[#allocation2 + $0x2b8] sm:$0xff] %vm1070, %v813
      %1159 = vst.msk [vmem:[#allocation2 + $0x2c0] sm:$0xff] %vm1070, %v815
      %1160 = vst.msk [vmem:[#allocation2 + $0x2c8] sm:$0xff] %vm1070, %v817
      %1161 = vst.msk [vmem:[#allocation2 + $0x2d0] sm:$0xff] %vm1070, %v819
      %1162 = vst.msk [vmem:[#allocation2 + $0x2d8] sm:$0xff] %vm1070, %v821
      %1163 = vst.msk [vmem:[#allocation2 + $0x2e0] sm:$0xff] %vm1070, %v823
      %1164 = vst.msk [vmem:[#allocation2 + $0x2e8] sm:$0xff] %vm1070, %v825
      %1165 = vst.msk [vmem:[#allocation2 + $0x2f0] sm:$0xff] %vm1070, %v827
      %1166 = vst.msk [vmem:[#allocation2 + $0x2f8] sm:$0xff] %vm1070, %v829
      %1167 = vst.msk [vmem:[#allocation2 + $0x300] sm:$0xff] %vm1070, %v831
      %1168 = vst.msk [vmem:[#allocation2 + $0x308] sm:$0xff] %vm1070, %v833
      %1169 = vst.msk [vmem:[#allocation2 + $0x310] sm:$0xff] %vm1070, %v835
      %1170 = vst.msk [vmem:[#allocation2 + $0x318] sm:$0xff] %vm1070, %v837
      %1171 = vst.msk [vmem:[#allocation2 + $0x320] sm:$0xff] %vm1070, %v839
      %1172 = vst.msk [vmem:[#allocation2 + $0x328] sm:$0xff] %vm1070, %v841
      %1173 = vst.msk [vmem:[#allocation2 + $0x330] sm:$0xff] %vm1070, %v843
      %1174 = vst.msk [vmem:[#allocation2 + $0x338] sm:$0xff] %vm1070, %v845
      %1175 = vst.msk [vmem:[#allocation2 + $0x340] sm:$0xff] %vm1070, %v847
      %1176 = vst.msk [vmem:[#allocation2 + $0x348] sm:$0xff] %vm1070, %v849
      %1177 = vst.msk [vmem:[#allocation2 + $0x350] sm:$0xff] %vm1070, %v851
      %1178 = vst.msk [vmem:[#allocation2 + $0x358] sm:$0xff] %vm1070, %v853
      %1179 = vst.msk [vmem:[#allocation2 + $0x360] sm:$0xff] %vm1070, %v855
      %1180 = vst.msk [vmem:[#allocation2 + $0x368] sm:$0xff] %vm1070, %v857
      %1181 = vst.msk [vmem:[#allocation2 + $0x370] sm:$0xff] %vm1070, %v859
      %1182 = vst.msk [vmem:[#allocation2 + $0x378] sm:$0xff] %vm1070, %v861
      %1183 = vst.msk [vmem:[#allocation2 + $0x380] sm:$0xff] %vm1070, %v863
      %1184 = vst.msk [vmem:[#allocation2 + $0x388] sm:$0xff] %vm1070, %v865
      %1185 = vst.msk [vmem:[#allocation2 + $0x390] sm:$0xff] %vm1070, %v867
      %1186 = vst.msk [vmem:[#allocation2 + $0x398] sm:$0xff] %vm1070, %v869
      %1187 = vst.msk [vmem:[#allocation2 + $0x3a0] sm:$0xff] %vm1070, %v871
      %1188 = vst.msk [vmem:[#allocation2 + $0x3a8] sm:$0xff] %vm1070, %v873
      %1189 = vst.msk [vmem:[#allocation2 + $0x3b0] sm:$0xff] %vm1070, %v875
      %1190 = vst.msk [vmem:[#allocation2 + $0x3b8] sm:$0xff] %vm1070, %v877
      %1191 = vst.msk [vmem:[#allocation2 + $0x3c0] sm:$0xff] %vm1070, %v879
      %1192 = vst.msk [vmem:[#allocation2 + $0x3c8] sm:$0xff] %vm1070, %v881
      %1193 = vst.msk [vmem:[#allocation2 + $0x3d0] sm:$0xff] %vm1070, %v883
      %1194 = vst.msk [vmem:[#allocation2 + $0x3d8] sm:$0xff] %vm1070, %v885
      %1195 = vst.msk [vmem:[#allocation2 + $0x3e0] sm:$0xff] %vm1070, %v887
      %1196 = vst.msk [vmem:[#allocation2 + $0x3e8] sm:$0xff] %vm1070, %v889
      %1197 = vst.msk [vmem:[#allocation2 + $0x3f0] sm:$0xff] %vm1070, %v891
      %1198 = vst.msk [vmem:[#allocation2 + $0x3f8] sm:$0xff] %vm1070, %v893
      %1199 = vst.msk [vmem:[#allocation2 + $0x400] sm:$0xff] %vm1070, %v895
      %1200 = vst.msk [vmem:[#allocation2 + $0x408] sm:$0xff] %vm1070, %v897
      %1201 = vst.msk [vmem:[#allocation2 + $0x410] sm:$0xff] %vm1070, %v899
      %1202 = vst.msk [vmem:[#allocation2 + $0x418] sm:$0xff] %vm1070, %v901
      %1203 = vst.msk [vmem:[#allocation2 + $0x420] sm:$0xff] %vm1070, %v903
      %1204 = vst.msk [vmem:[#allocation2 + $0x428] sm:$0xff] %vm1070, %v905
      %1205 = vst.msk [vmem:[#allocation2 + $0x430] sm:$0xff] %vm1070, %v907
      %1206 = vst.msk [vmem:[#allocation2 + $0x438] sm:$0xff] %vm1070, %v909
      %1207 = vst.msk [vmem:[#allocation2 + $0x440] sm:$0xff] %vm1070, %v911
      %1208 = vst.msk [vmem:[#allocation2 + $0x448] sm:$0xff] %vm1070, %v913
      %1209 = vst.msk [vmem:[#allocation2 + $0x450] sm:$0xff] %vm1070, %v915
      %1210 = vst.msk [vmem:[#allocation2 + $0x458] sm:$0xff] %vm1070, %v917
      %1211 = vst.msk [vmem:[#allocation2 + $0x460] sm:$0xff] %vm1070, %v919
      %1212 = vst.msk [vmem:[#allocation2 + $0x468] sm:$0xff] %vm1070, %v921
      %1213 = vst.msk [vmem:[#allocation2 + $0x470] sm:$0xff] %vm1070, %v923
      %1214 = vst.msk [vmem:[#allocation2 + $0x478] sm:$0xff] %vm1070, %v925
      %v1215 = vlaneseq
      %v1216 = vand.u32 %v1215, 127
      %v1217 = vsub.s32 %v1216, 16
      %vm1218 = vcmp.lt.s32.totalorder %v1217, 0
      %v1219 = vsub.s32 0, %v1217
      %v1220 = vsel %vm1218, %v1219, %v1217
      %v1221 = vmul.u32.u64.compose %v1220, 2454267026
      %v1222 = vextract.low.u32 %v1221
      %v1223 = vextract.high.u32 %v1221
      %vm1224 = vc.u32 %v1222, 2454267026
      %v1225 = vsel %vm1224, 1, 0
      %v1226 = vadd.s32 %v1223, %v1225
      %v1227 = vshrl.u32 %v1226, 2
      %v1228 = vmul.u32 %v1227, 7
      %v1229 = vsub.s32 %v1220, %v1228
      %v1230 = vsub.s32 0, %v1229
      %v1231 = vsel %vm1218, %v1230, %v1229
      %vm1232 = vcmp.ne.s32.totalorder %v1231, 0
      %vm1233 = vcmp.lt.s32.totalorder %v1231, 0
      %vm1234 = vmand %vm1233, %vm1232
      %v1235 = vadd.s32 %v1231, 7
      %v1236 = vsel %vm1234, %v1235, %v1231
      %vm1237 = vcmp.ge.s32.totalorder %v1216, 16
      %vm1238 = vcmp.lt.s32.totalorder %v1216, 65
      %vm1239 = vmand %vm1237, %vm1238
      %vm1240 = vcmp.ge.s32.totalorder %v1236, 5
      %vm1241 = vmand %vm1239, %vm1240
      %v1242 = vsel %vm1241, 0.0, 1.0
      %vm1243 = vcmp.ge.s32.totalorder %v1236, 6
      %vm1244 = vmand %vm1239, %vm1243
      %v1245 = vsel %vm1244, 0.0, 1.0
      %vm1246 = vcmp.lt.s32.totalorder %v1236, 1
      %vm1247 = vmand %vm1239, %vm1246
      %v1248 = vsel %vm1247, 0.0, 1.0
      %vm1249 = vcmp.lt.s32.totalorder %v1236, 2
      %vm1250 = vmand %vm1239, %vm1249
      %v1251 = vsel %vm1250, 0.0, 1.0
      loop: start=0, step=1, limit=36
      $region29: #{depthwise_conv2d.1} parent=27 // loop_pre_header
        _
      $region30: #{depthwise_conv2d.1} parent=27 // loop_header
        %s1253 = sphi 0, %s1257
        %p1254 = scmp.ge.s32.totalorder %s1253, 36
      $region31: #{depthwise_conv2d.1} parent=27 // loop_header_branch
        %1256 = sbr.rel (%p1254) target = $region35
      $region32: #{depthwise_conv2d.1} parent=27 // loop_body
        %s1258 = smul.u32 %s1253, 32
        %s1259 = scalar_lea.vmem [#allocation2], %s1258
        %v1260 = vld [vmem:[%s1259] sm:$0xff]
        %v1261 = vld [vmem:[%s1259 + $0x8] sm:$0xff]
        %v1262 = vld [vmem:[%s1259 + $0x10] sm:$0xff]
        %v1263 = vld [vmem:[%s1259 + $0x18] sm:$0xff]
        %s1264 = scalar_lea.vmem %s193, %s1258
        %v1265 = vld [vmem:[%s1264] sm:$0xff]
        %v1266 = vld [vmem:[%s1264 + $0x8] sm:$0xff]
        %v1267 = vld [vmem:[%s1264 + $0x10] sm:$0xff]
        %v1268 = vld [vmem:[%s1264 + $0x18] sm:$0xff]
        %v1269 = vmul.f32 %v1260, %v1242
        %v1270 = vmul.f32 %v1261, %v1242
        %v1271 = vmul.f32 %v1262, %v1242
        %v1272 = vmul.f32 %v1263, %v1242
        %v1273 = vmul.f32 %v1260, %v1245
        %v1274 = vmul.f32 %v1261, %v1245
        %v1275 = vmul.f32 %v1262, %v1245
        %v1276 = vmul.f32 %v1263, %v1245
        %v1277 = vmul.f32 %v1260, %v1248
        %v1278 = vmul.f32 %v1261, %v1248
        %v1279 = vmul.f32 %v1262, %v1248
        %v1280 = vmul.f32 %v1263, %v1248
        %v1281 = vmul.f32 %v1260, %v1251
        %v1282 = vmul.f32 %v1261, %v1251
        %v1283 = vmul.f32 %v1262, %v1251
        %v1284 = vmul.f32 %v1263, %v1251
        %1286 = vset.pattern.permute.xlu0 0
        %1287 = vperm.xlu0 %1286, %v1265
        %v1288 = vpop.permute.xlu0 %1287
        %1291 = vset.pattern.permute.xlu0 0
        %1292 = vperm.xlu0 %1291, %v1266
        %v1293 = vpop.permute.xlu0 %1292
        %1296 = vset.pattern.permute.xlu0 0
        %1297 = vperm.xlu0 %1296, %v1267
        %v1298 = vpop.permute.xlu0 %1297
        %1301 = vset.pattern.permute.xlu0 0
        %1302 = vperm.xlu0 %1301, %v1268
        %v1303 = vpop.permute.xlu0 %1302
        %v1305 = vmul.f32 %v1269, %v1288
        %v1306 = vmul.f32 %v1270, %v1293
        %v1307 = vmul.f32 %v1271, %v1298
        %v1308 = vmul.f32 %v1272, %v1303
        %v1309 = vadd.f32 %v1305, 0.0
        %v1310 = vadd.f32 %v1306, 0.0
        %v1311 = vadd.f32 %v1307, 0.0
        %v1312 = vadd.f32 %v1308, 0.0
        %1313 = vset.pattern.permute.xlu0 1
        %1314 = vperm.xlu0 %1313, %v1265
        %v1315 = vpop.permute.xlu0 %1314
        %1317 = vset.pattern.permute.xlu0 1
        %1318 = vperm.xlu0 %1317, %v1266
        %v1319 = vpop.permute.xlu0 %1318
        %1321 = vset.pattern.permute.xlu0 1
        %1322 = vperm.xlu0 %1321, %v1267
        %v1323 = vpop.permute.xlu0 %1322
        %1325 = vset.pattern.permute.xlu0 1
        %1326 = vperm.xlu0 %1325, %v1268
        %v1327 = vpop.permute.xlu0 %1326
        %v1329 = vmul.f32 %v1273, %v1315
        %v1330 = vmul.f32 %v1274, %v1319
        %v1331 = vmul.f32 %v1275, %v1323
        %v1332 = vmul.f32 %v1276, %v1327
        %1337 = vrot.lane.b32.xlu0 %v1329, 127
        %v1338 = vpop.permute.xlu0 %1337
        %1339 = vrot.lane.b32.xlu0 %v1330, 127
        %v1340 = vpop.permute.xlu0 %1339
        %1341 = vrot.lane.b32.xlu0 %v1331, 127
        %v1342 = vpop.permute.xlu0 %1341
        %1343 = vrot.lane.b32.xlu0 %v1332, 127
        %v1344 = vpop.permute.xlu0 %1343
        %v1349 = vadd.f32 %v1309, %v1338
        %v1350 = vadd.f32 %v1310, %v1340
        %v1351 = vadd.f32 %v1311, %v1342
        %v1352 = vadd.f32 %v1312, %v1344
        %1353 = vset.pattern.permute.xlu0 2
        %1354 = vperm.xlu0 %1353, %v1265
        %v1355 = vpop.permute.xlu0 %1354
        %1357 = vset.pattern.permute.xlu0 2
        %1358 = vperm.xlu0 %1357, %v1266
        %v1359 = vpop.permute.xlu0 %1358
        %1361 = vset.pattern.permute.xlu0 2
        %1362 = vperm.xlu0 %1361, %v1267
        %v1363 = vpop.permute.xlu0 %1362
        %1365 = vset.pattern.permute.xlu0 2
        %1366 = vperm.xlu0 %1365, %v1268
        %v1367 = vpop.permute.xlu0 %1366
        %v1369 = vmul.f32 %v1260, %v1355
        %v1370 = vmul.f32 %v1261, %v1359
        %v1371 = vmul.f32 %v1262, %v1363
        %v1372 = vmul.f32 %v1263, %v1367
        %1377 = vrot.lane.b32.xlu0 %v1369, 126
        %v1378 = vpop.permute.xlu0 %1377
        %1379 = vrot.lane.b32.xlu0 %v1370, 126
        %v1380 = vpop.permute.xlu0 %1379
        %1381 = vrot.lane.b32.xlu0 %v1371, 126
        %v1382 = vpop.permute.xlu0 %1381
        %1383 = vrot.lane.b32.xlu0 %v1372, 126
        %v1384 = vpop.permute.xlu0 %1383
        %v1389 = vadd.f32 %v1349, %v1378
        %v1390 = vadd.f32 %v1350, %v1380
        %v1391 = vadd.f32 %v1351, %v1382
        %v1392 = vadd.f32 %v1352, %v1384
        %1393 = vset.pattern.permute.xlu0 3
        %1394 = vperm.xlu0 %1393, %v1265
        %v1395 = vpop.permute.xlu0 %1394
        %1397 = vset.pattern.permute.xlu0 3
        %1398 = vperm.xlu0 %1397, %v1266
        %v1399 = vpop.permute.xlu0 %1398
        %1401 = vset.pattern.permute.xlu0 3
        %1402 = vperm.xlu0 %1401, %v1267
        %v1403 = vpop.permute.xlu0 %1402
        %1405 = vset.pattern.permute.xlu0 3
        %1406 = vperm.xlu0 %1405, %v1268
        %v1407 = vpop.permute.xlu0 %1406
        %v1409 = vmul.f32 %v1277, %v1395
        %v1410 = vmul.f32 %v1278, %v1399
        %v1411 = vmul.f32 %v1279, %v1403
        %v1412 = vmul.f32 %v1280, %v1407
        %1417 = vrot.lane.b32.xlu0 %v1409, 125
        %v1418 = vpop.permute.xlu0 %1417
        %1419 = vrot.lane.b32.xlu0 %v1410, 125
        %v1420 = vpop.permute.xlu0 %1419
        %1421 = vrot.lane.b32.xlu0 %v1411, 125
        %v1422 = vpop.permute.xlu0 %1421
        %1423 = vrot.lane.b32.xlu0 %v1412, 125
        %v1424 = vpop.permute.xlu0 %1423
        %v1429 = vadd.f32 %v1389, %v1418
        %v1430 = vadd.f32 %v1390, %v1420
        %v1431 = vadd.f32 %v1391, %v1422
        %v1432 = vadd.f32 %v1392, %v1424
        %1433 = vset.pattern.permute.xlu0 4
        %1434 = vperm.xlu0 %1433, %v1265
        %v1435 = vpop.permute.xlu0 %1434
        %1437 = vset.pattern.permute.xlu0 4
        %1438 = vperm.xlu0 %1437, %v1266
        %v1439 = vpop.permute.xlu0 %1438
        %1441 = vset.pattern.permute.xlu0 4
        %1442 = vperm.xlu0 %1441, %v1267
        %v1443 = vpop.permute.xlu0 %1442
        %1445 = vset.pattern.permute.xlu0 4
        %1446 = vperm.xlu0 %1445, %v1268
        %v1447 = vpop.permute.xlu0 %1446
        %v1449 = vmul.f32 %v1281, %v1435
        %v1450 = vmul.f32 %v1282, %v1439
        %v1451 = vmul.f32 %v1283, %v1443
        %v1452 = vmul.f32 %v1284, %v1447
        %1457 = vrot.lane.b32.xlu0 %v1449, 124
        %v1458 = vpop.permute.xlu0 %1457
        %1459 = vrot.lane.b32.xlu0 %v1450, 124
        %v1460 = vpop.permute.xlu0 %1459
        %1461 = vrot.lane.b32.xlu0 %v1451, 124
        %v1462 = vpop.permute.xlu0 %1461
        %1463 = vrot.lane.b32.xlu0 %v1452, 124
        %v1464 = vpop.permute.xlu0 %1463
        %v1469 = vadd.f32 %v1429, %v1458
        %v1470 = vadd.f32 %v1430, %v1460
        %v1471 = vadd.f32 %v1431, %v1462
        %v1472 = vadd.f32 %v1432, %v1464
        %1473 = vset.pattern.permute.xlu0 5
        %1474 = vperm.xlu0 %1473, %v1265
        %v1475 = vpop.permute.xlu0 %1474
        %1477 = vset.pattern.permute.xlu0 5
        %1478 = vperm.xlu0 %1477, %v1266
        %v1479 = vpop.permute.xlu0 %1478
        %1481 = vset.pattern.permute.xlu0 5
        %1482 = vperm.xlu0 %1481, %v1267
        %v1483 = vpop.permute.xlu0 %1482
        %1485 = vset.pattern.permute.xlu0 5
        %1486 = vperm.xlu0 %1485, %v1268
        %v1487 = vpop.permute.xlu0 %1486
        %v1489 = vmul.f32 %v1269, %v1475
        %v1490 = vmul.f32 %v1270, %v1479
        %v1491 = vmul.f32 %v1271, %v1483
        %v1492 = vmul.f32 %v1272, %v1487
        %1497 = vrot.lane.b32.xlu0 %v1489, 121
        %v1498 = vpop.permute.xlu0 %1497
        %1499 = vrot.lane.b32.xlu0 %v1490, 121
        %v1500 = vpop.permute.xlu0 %1499
        %1501 = vrot.lane.b32.xlu0 %v1491, 121
        %v1502 = vpop.permute.xlu0 %1501
        %1503 = vrot.lane.b32.xlu0 %v1492, 121
        %v1504 = vpop.permute.xlu0 %1503
        %v1509 = vadd.f32 %v1469, %v1498
        %v1510 = vadd.f32 %v1470, %v1500
        %v1511 = vadd.f32 %v1471, %v1502
        %v1512 = vadd.f32 %v1472, %v1504
        %1513 = vset.pattern.permute.xlu0 6
        %1514 = vperm.xlu0 %1513, %v1265
        %v1515 = vpop.permute.xlu0 %1514
        %1517 = vset.pattern.permute.xlu0 6
        %1518 = vperm.xlu0 %1517, %v1266
        %v1519 = vpop.permute.xlu0 %1518
        %1521 = vset.pattern.permute.xlu0 6
        %1522 = vperm.xlu0 %1521, %v1267
        %v1523 = vpop.permute.xlu0 %1522
        %1525 = vset.pattern.permute.xlu0 6
        %1526 = vperm.xlu0 %1525, %v1268
        %v1527 = vpop.permute.xlu0 %1526
        %v1529 = vmul.f32 %v1273, %v1515
        %v1530 = vmul.f32 %v1274, %v1519
        %v1531 = vmul.f32 %v1275, %v1523
        %v1532 = vmul.f32 %v1276, %v1527
        %1537 = vrot.lane.b32.xlu0 %v1529, 120
        %v1538 = vpop.permute.xlu0 %1537
        %1539 = vrot.lane.b32.xlu0 %v1530, 120
        %v1540 = vpop.permute.xlu0 %1539
        %1541 = vrot.lane.b32.xlu0 %v1531, 120
        %v1542 = vpop.permute.xlu0 %1541
        %1543 = vrot.lane.b32.xlu0 %v1532, 120
        %v1544 = vpop.permute.xlu0 %1543
        %v1549 = vadd.f32 %v1509, %v1538
        %v1550 = vadd.f32 %v1510, %v1540
        %v1551 = vadd.f32 %v1511, %v1542
        %v1552 = vadd.f32 %v1512, %v1544
        %1553 = vset.pattern.permute.xlu0 7
        %1554 = vperm.xlu0 %1553, %v1265
        %v1555 = vpop.permute.xlu0 %1554
        %1557 = vset.pattern.permute.xlu0 7
        %1558 = vperm.xlu0 %1557, %v1266
        %v1559 = vpop.permute.xlu0 %1558
        %1561 = vset.pattern.permute.xlu0 7
        %1562 = vperm.xlu0 %1561, %v1267
        %v1563 = vpop.permute.xlu0 %1562
        %1565 = vset.pattern.permute.xlu0 7
        %1566 = vperm.xlu0 %1565, %v1268
        %v1567 = vpop.permute.xlu0 %1566
        %v1569 = vmul.f32 %v1260, %v1555
        %v1570 = vmul.f32 %v1261, %v1559
        %v1571 = vmul.f32 %v1262, %v1563
        %v1572 = vmul.f32 %v1263, %v1567
        %1577 = vrot.lane.b32.xlu0 %v1569, 119
        %v1578 = vpop.permute.xlu0 %1577
        %1579 = vrot.lane.b32.xlu0 %v1570, 119
        %v1580 = vpop.permute.xlu0 %1579
        %1581 = vrot.lane.b32.xlu0 %v1571, 119
        %v1582 = vpop.permute.xlu0 %1581
        %1583 = vrot.lane.b32.xlu0 %v1572, 119
        %v1584 = vpop.permute.xlu0 %1583
        %v1589 = vadd.f32 %v1549, %v1578
        %v1590 = vadd.f32 %v1550, %v1580
        %v1591 = vadd.f32 %v1551, %v1582
        %v1592 = vadd.f32 %v1552, %v1584
        %1593 = vset.pattern.permute.xlu0 8
        %1594 = vperm.xlu0 %1593, %v1265
        %v1595 = vpop.permute.xlu0 %1594
        %1597 = vset.pattern.permute.xlu0 8
        %1598 = vperm.xlu0 %1597, %v1266
        %v1599 = vpop.permute.xlu0 %1598
        %1601 = vset.pattern.permute.xlu0 8
        %1602 = vperm.xlu0 %1601, %v1267
        %v1603 = vpop.permute.xlu0 %1602
        %1605 = vset.pattern.permute.xlu0 8
        %1606 = vperm.xlu0 %1605, %v1268
        %v1607 = vpop.permute.xlu0 %1606
        %v1609 = vmul.f32 %v1277, %v1595
        %v1610 = vmul.f32 %v1278, %v1599
        %v1611 = vmul.f32 %v1279, %v1603
        %v1612 = vmul.f32 %v1280, %v1607
        %1617 = vrot.lane.b32.xlu0 %v1609, 118
        %v1618 = vpop.permute.xlu0 %1617
        %1619 = vrot.lane.b32.xlu0 %v1610, 118
        %v1620 = vpop.permute.xlu0 %1619
        %1621 = vrot.lane.b32.xlu0 %v1611, 118
        %v1622 = vpop.permute.xlu0 %1621
        %1623 = vrot.lane.b32.xlu0 %v1612, 118
        %v1624 = vpop.permute.xlu0 %1623
        %v1629 = vadd.f32 %v1589, %v1618
        %v1630 = vadd.f32 %v1590, %v1620
        %v1631 = vadd.f32 %v1591, %v1622
        %v1632 = vadd.f32 %v1592, %v1624
        %1633 = vset.pattern.permute.xlu0 9
        %1634 = vperm.xlu0 %1633, %v1265
        %v1635 = vpop.permute.xlu0 %1634
        %1637 = vset.pattern.permute.xlu0 9
        %1638 = vperm.xlu0 %1637, %v1266
        %v1639 = vpop.permute.xlu0 %1638
        %1641 = vset.pattern.permute.xlu0 9
        %1642 = vperm.xlu0 %1641, %v1267
        %v1643 = vpop.permute.xlu0 %1642
        %1645 = vset.pattern.permute.xlu0 9
        %1646 = vperm.xlu0 %1645, %v1268
        %v1647 = vpop.permute.xlu0 %1646
        %v1649 = vmul.f32 %v1281, %v1635
        %v1650 = vmul.f32 %v1282, %v1639
        %v1651 = vmul.f32 %v1283, %v1643
        %v1652 = vmul.f32 %v1284, %v1647
        %1657 = vrot.lane.b32.xlu0 %v1649, 117
        %v1658 = vpop.permute.xlu0 %1657
        %1659 = vrot.lane.b32.xlu0 %v1650, 117
        %v1660 = vpop.permute.xlu0 %1659
        %1661 = vrot.lane.b32.xlu0 %v1651, 117
        %v1662 = vpop.permute.xlu0 %1661
        %1663 = vrot.lane.b32.xlu0 %v1652, 117
        %v1664 = vpop.permute.xlu0 %1663
        %v1669 = vadd.f32 %v1629, %v1658
        %v1670 = vadd.f32 %v1630, %v1660
        %v1671 = vadd.f32 %v1631, %v1662
        %v1672 = vadd.f32 %v1632, %v1664
        %1673 = vset.pattern.permute.xlu0 10
        %1674 = vperm.xlu0 %1673, %v1265
        %v1675 = vpop.permute.xlu0 %1674
        %1677 = vset.pattern.permute.xlu0 10
        %1678 = vperm.xlu0 %1677, %v1266
        %v1679 = vpop.permute.xlu0 %1678
        %1681 = vset.pattern.permute.xlu0 10
        %1682 = vperm.xlu0 %1681, %v1267
        %v1683 = vpop.permute.xlu0 %1682
        %1685 = vset.pattern.permute.xlu0 10
        %1686 = vperm.xlu0 %1685, %v1268
        %v1687 = vpop.permute.xlu0 %1686
        %v1689 = vmul.f32 %v1269, %v1675
        %v1690 = vmul.f32 %v1270, %v1679
        %v1691 = vmul.f32 %v1271, %v1683
        %v1692 = vmul.f32 %v1272, %v1687
        %1697 = vrot.lane.b32.xlu0 %v1689, 114
        %v1698 = vpop.permute.xlu0 %1697
        %1699 = vrot.lane.b32.xlu0 %v1690, 114
        %v1700 = vpop.permute.xlu0 %1699
        %1701 = vrot.lane.b32.xlu0 %v1691, 114
        %v1702 = vpop.permute.xlu0 %1701
        %1703 = vrot.lane.b32.xlu0 %v1692, 114
        %v1704 = vpop.permute.xlu0 %1703
        %v1709 = vadd.f32 %v1669, %v1698
        %v1710 = vadd.f32 %v1670, %v1700
        %v1711 = vadd.f32 %v1671, %v1702
        %v1712 = vadd.f32 %v1672, %v1704
        %1713 = vset.pattern.permute.xlu0 11
        %1714 = vperm.xlu0 %1713, %v1265
        %v1715 = vpop.permute.xlu0 %1714
        %1717 = vset.pattern.permute.xlu0 11
        %1718 = vperm.xlu0 %1717, %v1266
        %v1719 = vpop.permute.xlu0 %1718
        %1721 = vset.pattern.permute.xlu0 11
        %1722 = vperm.xlu0 %1721, %v1267
        %v1723 = vpop.permute.xlu0 %1722
        %1725 = vset.pattern.permute.xlu0 11
        %1726 = vperm.xlu0 %1725, %v1268
        %v1727 = vpop.permute.xlu0 %1726
        %v1729 = vmul.f32 %v1273, %v1715
        %v1730 = vmul.f32 %v1274, %v1719
        %v1731 = vmul.f32 %v1275, %v1723
        %v1732 = vmul.f32 %v1276, %v1727
        %1737 = vrot.lane.b32.xlu0 %v1729, 113
        %v1738 = vpop.permute.xlu0 %1737
        %1739 = vrot.lane.b32.xlu0 %v1730, 113
        %v1740 = vpop.permute.xlu0 %1739
        %1741 = vrot.lane.b32.xlu0 %v1731, 113
        %v1742 = vpop.permute.xlu0 %1741
        %1743 = vrot.lane.b32.xlu0 %v1732, 113
        %v1744 = vpop.permute.xlu0 %1743
        %v1749 = vadd.f32 %v1709, %v1738
        %v1750 = vadd.f32 %v1710, %v1740
        %v1751 = vadd.f32 %v1711, %v1742
        %v1752 = vadd.f32 %v1712, %v1744
        %1753 = vset.pattern.permute.xlu0 12
        %1754 = vperm.xlu0 %1753, %v1265
        %v1755 = vpop.permute.xlu0 %1754
        %1757 = vset.pattern.permute.xlu0 12
        %1758 = vperm.xlu0 %1757, %v1266
        %v1759 = vpop.permute.xlu0 %1758
        %1761 = vset.pattern.permute.xlu0 12
        %1762 = vperm.xlu0 %1761, %v1267
        %v1763 = vpop.permute.xlu0 %1762
        %1765 = vset.pattern.permute.xlu0 12
        %1766 = vperm.xlu0 %1765, %v1268
        %v1767 = vpop.permute.xlu0 %1766
        %v1769 = vmul.f32 %v1260, %v1755
        %v1770 = vmul.f32 %v1261, %v1759
        %v1771 = vmul.f32 %v1262, %v1763
        %v1772 = vmul.f32 %v1263, %v1767
        %1777 = vrot.lane.b32.xlu0 %v1769, 112
        %v1778 = vpop.permute.xlu0 %1777
        %1779 = vrot.lane.b32.xlu0 %v1770, 112
        %v1780 = vpop.permute.xlu0 %1779
        %1781 = vrot.lane.b32.xlu0 %v1771, 112
        %v1782 = vpop.permute.xlu0 %1781
        %1783 = vrot.lane.b32.xlu0 %v1772, 112
        %v1784 = vpop.permute.xlu0 %1783
        %v1789 = vadd.f32 %v1749, %v1778
        %v1790 = vadd.f32 %v1750, %v1780
        %v1791 = vadd.f32 %v1751, %v1782
        %v1792 = vadd.f32 %v1752, %v1784
        %1793 = vset.pattern.permute.xlu0 13
        %1794 = vperm.xlu0 %1793, %v1265
        %v1795 = vpop.permute.xlu0 %1794
        %1797 = vset.pattern.permute.xlu0 13
        %1798 = vperm.xlu0 %1797, %v1266
        %v1799 = vpop.permute.xlu0 %1798
        %1801 = vset.pattern.permute.xlu0 13
        %1802 = vperm.xlu0 %1801, %v1267
        %v1803 = vpop.permute.xlu0 %1802
        %1805 = vset.pattern.permute.xlu0 13
        %1806 = vperm.xlu0 %1805, %v1268
        %v1807 = vpop.permute.xlu0 %1806
        %v1809 = vmul.f32 %v1277, %v1795
        %v1810 = vmul.f32 %v1278, %v1799
        %v1811 = vmul.f32 %v1279, %v1803
        %v1812 = vmul.f32 %v1280, %v1807
        %1817 = vrot.lane.b32.xlu0 %v1809, 111
        %v1818 = vpop.permute.xlu0 %1817
        %1819 = vrot.lane.b32.xlu0 %v1810, 111
        %v1820 = vpop.permute.xlu0 %1819
        %1821 = vrot.lane.b32.xlu0 %v1811, 111
        %v1822 = vpop.permute.xlu0 %1821
        %1823 = vrot.lane.b32.xlu0 %v1812, 111
        %v1824 = vpop.permute.xlu0 %1823
        %v1829 = vadd.f32 %v1789, %v1818
        %v1830 = vadd.f32 %v1790, %v1820
        %v1831 = vadd.f32 %v1791, %v1822
        %v1832 = vadd.f32 %v1792, %v1824
        %1833 = vset.pattern.permute.xlu0 14
        %1834 = vperm.xlu0 %1833, %v1265
        %v1835 = vpop.permute.xlu0 %1834
        %1837 = vset.pattern.permute.xlu0 14
        %1838 = vperm.xlu0 %1837, %v1266
        %v1839 = vpop.permute.xlu0 %1838
        %1841 = vset.pattern.permute.xlu0 14
        %1842 = vperm.xlu0 %1841, %v1267
        %v1843 = vpop.permute.xlu0 %1842
        %1845 = vset.pattern.permute.xlu0 14
        %1846 = vperm.xlu0 %1845, %v1268
        %v1847 = vpop.permute.xlu0 %1846
        %v1849 = vmul.f32 %v1281, %v1835
        %v1850 = vmul.f32 %v1282, %v1839
        %v1851 = vmul.f32 %v1283, %v1843
        %v1852 = vmul.f32 %v1284, %v1847
        %1857 = vrot.lane.b32.xlu0 %v1849, 110
        %v1858 = vpop.permute.xlu0 %1857
        %1859 = vrot.lane.b32.xlu0 %v1850, 110
        %v1860 = vpop.permute.xlu0 %1859
        %1861 = vrot.lane.b32.xlu0 %v1851, 110
        %v1862 = vpop.permute.xlu0 %1861
        %1863 = vrot.lane.b32.xlu0 %v1852, 110
        %v1864 = vpop.permute.xlu0 %1863
        %v1869 = vadd.f32 %v1829, %v1858
        %v1870 = vadd.f32 %v1830, %v1860
        %v1871 = vadd.f32 %v1831, %v1862
        %v1872 = vadd.f32 %v1832, %v1864
        %1873 = vset.pattern.permute.xlu0 15
        %1874 = vperm.xlu0 %1873, %v1265
        %v1875 = vpop.permute.xlu0 %1874
        %1877 = vset.pattern.permute.xlu0 15
        %1878 = vperm.xlu0 %1877, %v1266
        %v1879 = vpop.permute.xlu0 %1878
        %1881 = vset.pattern.permute.xlu0 15
        %1882 = vperm.xlu0 %1881, %v1267
        %v1883 = vpop.permute.xlu0 %1882
        %1885 = vset.pattern.permute.xlu0 15
        %1886 = vperm.xlu0 %1885, %v1268
        %v1887 = vpop.permute.xlu0 %1886
        %v1889 = vmul.f32 %v1269, %v1875
        %v1890 = vmul.f32 %v1270, %v1879
        %v1891 = vmul.f32 %v1271, %v1883
        %v1892 = vmul.f32 %v1272, %v1887
        %1897 = vrot.lane.b32.xlu0 %v1889, 107
        %v1898 = vpop.permute.xlu0 %1897
        %1899 = vrot.lane.b32.xlu0 %v1890, 107
        %v1900 = vpop.permute.xlu0 %1899
        %1901 = vrot.lane.b32.xlu0 %v1891, 107
        %v1902 = vpop.permute.xlu0 %1901
        %1903 = vrot.lane.b32.xlu0 %v1892, 107
        %v1904 = vpop.permute.xlu0 %1903
        %v1909 = vadd.f32 %v1869, %v1898
        %v1910 = vadd.f32 %v1870, %v1900
        %v1911 = vadd.f32 %v1871, %v1902
        %v1912 = vadd.f32 %v1872, %v1904
        %1913 = vset.pattern.permute.xlu0 16
        %1914 = vperm.xlu0 %1913, %v1265
        %v1915 = vpop.permute.xlu0 %1914
        %1917 = vset.pattern.permute.xlu0 16
        %1918 = vperm.xlu0 %1917, %v1266
        %v1919 = vpop.permute.xlu0 %1918
        %1921 = vset.pattern.permute.xlu0 16
        %1922 = vperm.xlu0 %1921, %v1267
        %v1923 = vpop.permute.xlu0 %1922
        %1925 = vset.pattern.permute.xlu0 16
        %1926 = vperm.xlu0 %1925, %v1268
        %v1927 = vpop.permute.xlu0 %1926
        %v1929 = vmul.f32 %v1273, %v1915
        %v1930 = vmul.f32 %v1274, %v1919
        %v1931 = vmul.f32 %v1275, %v1923
        %v1932 = vmul.f32 %v1276, %v1927
        %1937 = vrot.lane.b32.xlu0 %v1929, 106
        %v1938 = vpop.permute.xlu0 %1937
        %1939 = vrot.lane.b32.xlu0 %v1930, 106
        %v1940 = vpop.permute.xlu0 %1939
        %1941 = vrot.lane.b32.xlu0 %v1931, 106
        %v1942 = vpop.permute.xlu0 %1941
        %1943 = vrot.lane.b32.xlu0 %v1932, 106
        %v1944 = vpop.permute.xlu0 %1943
        %v1949 = vadd.f32 %v1909, %v1938
        %v1950 = vadd.f32 %v1910, %v1940
        %v1951 = vadd.f32 %v1911, %v1942
        %v1952 = vadd.f32 %v1912, %v1944
        %1953 = vset.pattern.permute.xlu0 17
        %1954 = vperm.xlu0 %1953, %v1265
        %v1955 = vpop.permute.xlu0 %1954
        %1957 = vset.pattern.permute.xlu0 17
        %1958 = vperm.xlu0 %1957, %v1266
        %v1959 = vpop.permute.xlu0 %1958
        %1961 = vset.pattern.permute.xlu0 17
        %1962 = vperm.xlu0 %1961, %v1267
        %v1963 = vpop.permute.xlu0 %1962
        %1965 = vset.pattern.permute.xlu0 17
        %1966 = vperm.xlu0 %1965, %v1268
        %v1967 = vpop.permute.xlu0 %1966
        %v1969 = vmul.f32 %v1260, %v1955
        %v1970 = vmul.f32 %v1261, %v1959
        %v1971 = vmul.f32 %v1262, %v1963
        %v1972 = vmul.f32 %v1263, %v1967
        %1977 = vrot.lane.b32.xlu0 %v1969, 105
        %v1978 = vpop.permute.xlu0 %1977
        %1979 = vrot.lane.b32.xlu0 %v1970, 105
        %v1980 = vpop.permute.xlu0 %1979
        %1981 = vrot.lane.b32.xlu0 %v1971, 105
        %v1982 = vpop.permute.xlu0 %1981
        %1983 = vrot.lane.b32.xlu0 %v1972, 105
        %v1984 = vpop.permute.xlu0 %1983
        %v1989 = vadd.f32 %v1949, %v1978
        %v1990 = vadd.f32 %v1950, %v1980
        %v1991 = vadd.f32 %v1951, %v1982
        %v1992 = vadd.f32 %v1952, %v1984
        %1993 = vset.pattern.permute.xlu0 18
        %1994 = vperm.xlu0 %1993, %v1265
        %v1995 = vpop.permute.xlu0 %1994
        %1997 = vset.pattern.permute.xlu0 18
        %1998 = vperm.xlu0 %1997, %v1266
        %v1999 = vpop.permute.xlu0 %1998
        %2001 = vset.pattern.permute.xlu0 18
        %2002 = vperm.xlu0 %2001, %v1267
        %v2003 = vpop.permute.xlu0 %2002
        %2005 = vset.pattern.permute.xlu0 18
        %2006 = vperm.xlu0 %2005, %v1268
        %v2007 = vpop.permute.xlu0 %2006
        %v2009 = vmul.f32 %v1277, %v1995
        %v2010 = vmul.f32 %v1278, %v1999
        %v2011 = vmul.f32 %v1279, %v2003
        %v2012 = vmul.f32 %v1280, %v2007
        %2017 = vrot.lane.b32.xlu0 %v2009, 104
        %v2018 = vpop.permute.xlu0 %2017
        %2019 = vrot.lane.b32.xlu0 %v2010, 104
        %v2020 = vpop.permute.xlu0 %2019
        %2021 = vrot.lane.b32.xlu0 %v2011, 104
        %v2022 = vpop.permute.xlu0 %2021
        %2023 = vrot.lane.b32.xlu0 %v2012, 104
        %v2024 = vpop.permute.xlu0 %2023
        %v2029 = vadd.f32 %v1989, %v2018
        %v2030 = vadd.f32 %v1990, %v2020
        %v2031 = vadd.f32 %v1991, %v2022
        %v2032 = vadd.f32 %v1992, %v2024
        %2033 = vset.pattern.permute.xlu0 19
        %2034 = vperm.xlu0 %2033, %v1265
        %v2035 = vpop.permute.xlu0 %2034
        %2037 = vset.pattern.permute.xlu0 19
        %2038 = vperm.xlu0 %2037, %v1266
        %v2039 = vpop.permute.xlu0 %2038
        %2041 = vset.pattern.permute.xlu0 19
        %2042 = vperm.xlu0 %2041, %v1267
        %v2043 = vpop.permute.xlu0 %2042
        %2045 = vset.pattern.permute.xlu0 19
        %2046 = vperm.xlu0 %2045, %v1268
        %v2047 = vpop.permute.xlu0 %2046
        %v2049 = vmul.f32 %v1281, %v2035
        %v2050 = vmul.f32 %v1282, %v2039
        %v2051 = vmul.f32 %v1283, %v2043
        %v2052 = vmul.f32 %v1284, %v2047
        %2057 = vrot.lane.b32.xlu0 %v2049, 103
        %v2058 = vpop.permute.xlu0 %2057
        %2059 = vrot.lane.b32.xlu0 %v2050, 103
        %v2060 = vpop.permute.xlu0 %2059
        %2061 = vrot.lane.b32.xlu0 %v2051, 103
        %v2062 = vpop.permute.xlu0 %2061
        %2063 = vrot.lane.b32.xlu0 %v2052, 103
        %v2064 = vpop.permute.xlu0 %2063
        %v2069 = vadd.f32 %v2029, %v2058
        %v2070 = vadd.f32 %v2030, %v2060
        %v2071 = vadd.f32 %v2031, %v2062
        %v2072 = vadd.f32 %v2032, %v2064
        %2073 = vset.pattern.permute.xlu0 20
        %2074 = vperm.xlu0 %2073, %v1265
        %v2075 = vpop.permute.xlu0 %2074
        %2077 = vset.pattern.permute.xlu0 20
        %2078 = vperm.xlu0 %2077, %v1266
        %v2079 = vpop.permute.xlu0 %2078
        %2081 = vset.pattern.permute.xlu0 20
        %2082 = vperm.xlu0 %2081, %v1267
        %v2083 = vpop.permute.xlu0 %2082
        %2085 = vset.pattern.permute.xlu0 20
        %2086 = vperm.xlu0 %2085, %v1268
        %v2087 = vpop.permute.xlu0 %2086
        %v2089 = vmul.f32 %v1269, %v2075
        %v2090 = vmul.f32 %v1270, %v2079
        %v2091 = vmul.f32 %v1271, %v2083
        %v2092 = vmul.f32 %v1272, %v2087
        %2097 = vrot.lane.b32.xlu0 %v2089, 100
        %v2098 = vpop.permute.xlu0 %2097
        %2099 = vrot.lane.b32.xlu0 %v2090, 100
        %v2100 = vpop.permute.xlu0 %2099
        %2101 = vrot.lane.b32.xlu0 %v2091, 100
        %v2102 = vpop.permute.xlu0 %2101
        %2103 = vrot.lane.b32.xlu0 %v2092, 100
        %v2104 = vpop.permute.xlu0 %2103
        %v2109 = vadd.f32 %v2069, %v2098
        %v2110 = vadd.f32 %v2070, %v2100
        %v2111 = vadd.f32 %v2071, %v2102
        %v2112 = vadd.f32 %v2072, %v2104
        %2113 = vset.pattern.permute.xlu0 21
        %2114 = vperm.xlu0 %2113, %v1265
        %v2115 = vpop.permute.xlu0 %2114
        %2117 = vset.pattern.permute.xlu0 21
        %2118 = vperm.xlu0 %2117, %v1266
        %v2119 = vpop.permute.xlu0 %2118
        %2121 = vset.pattern.permute.xlu0 21
        %2122 = vperm.xlu0 %2121, %v1267
        %v2123 = vpop.permute.xlu0 %2122
        %2125 = vset.pattern.permute.xlu0 21
        %2126 = vperm.xlu0 %2125, %v1268
        %v2127 = vpop.permute.xlu0 %2126
        %v2129 = vmul.f32 %v1273, %v2115
        %v2130 = vmul.f32 %v1274, %v2119
        %v2131 = vmul.f32 %v1275, %v2123
        %v2132 = vmul.f32 %v1276, %v2127
        %2137 = vrot.lane.b32.xlu0 %v2129, 99
        %v2138 = vpop.permute.xlu0 %2137
        %2139 = vrot.lane.b32.xlu0 %v2130, 99
        %v2140 = vpop.permute.xlu0 %2139
        %2141 = vrot.lane.b32.xlu0 %v2131, 99
        %v2142 = vpop.permute.xlu0 %2141
        %2143 = vrot.lane.b32.xlu0 %v2132, 99
        %v2144 = vpop.permute.xlu0 %2143
        %v2149 = vadd.f32 %v2109, %v2138
        %v2150 = vadd.f32 %v2110, %v2140
        %v2151 = vadd.f32 %v2111, %v2142
        %v2152 = vadd.f32 %v2112, %v2144
        %2153 = vset.pattern.permute.xlu0 22
        %2154 = vperm.xlu0 %2153, %v1265
        %v2155 = vpop.permute.xlu0 %2154
        %2157 = vset.pattern.permute.xlu0 22
        %2158 = vperm.xlu0 %2157, %v1266
        %v2159 = vpop.permute.xlu0 %2158
        %2161 = vset.pattern.permute.xlu0 22
        %2162 = vperm.xlu0 %2161, %v1267
        %v2163 = vpop.permute.xlu0 %2162
        %2165 = vset.pattern.permute.xlu0 22
        %2166 = vperm.xlu0 %2165, %v1268
        %v2167 = vpop.permute.xlu0 %2166
        %v2169 = vmul.f32 %v1260, %v2155
        %v2170 = vmul.f32 %v1261, %v2159
        %v2171 = vmul.f32 %v1262, %v2163
        %v2172 = vmul.f32 %v1263, %v2167
        %2177 = vrot.lane.b32.xlu0 %v2169, 98
        %v2178 = vpop.permute.xlu0 %2177
        %2179 = vrot.lane.b32.xlu0 %v2170, 98
        %v2180 = vpop.permute.xlu0 %2179
        %2181 = vrot.lane.b32.xlu0 %v2171, 98
        %v2182 = vpop.permute.xlu0 %2181
        %2183 = vrot.lane.b32.xlu0 %v2172, 98
        %v2184 = vpop.permute.xlu0 %2183
        %v2189 = vadd.f32 %v2149, %v2178
        %v2190 = vadd.f32 %v2150, %v2180
        %v2191 = vadd.f32 %v2151, %v2182
        %v2192 = vadd.f32 %v2152, %v2184
        %2193 = vset.pattern.permute.xlu0 23
        %2194 = vperm.xlu0 %2193, %v1265
        %v2195 = vpop.permute.xlu0 %2194
        %2197 = vset.pattern.permute.xlu0 23
        %2198 = vperm.xlu0 %2197, %v1266
        %v2199 = vpop.permute.xlu0 %2198
        %2201 = vset.pattern.permute.xlu0 23
        %2202 = vperm.xlu0 %2201, %v1267
        %v2203 = vpop.permute.xlu0 %2202
        %2205 = vset.pattern.permute.xlu0 23
        %2206 = vperm.xlu0 %2205, %v1268
        %v2207 = vpop.permute.xlu0 %2206
        %v2209 = vmul.f32 %v1277, %v2195
        %v2210 = vmul.f32 %v1278, %v2199
        %v2211 = vmul.f32 %v1279, %v2203
        %v2212 = vmul.f32 %v1280, %v2207
        %2217 = vrot.lane.b32.xlu0 %v2209, 97
        %v2218 = vpop.permute.xlu0 %2217
        %2219 = vrot.lane.b32.xlu0 %v2210, 97
        %v2220 = vpop.permute.xlu0 %2219
        %2221 = vrot.lane.b32.xlu0 %v2211, 97
        %v2222 = vpop.permute.xlu0 %2221
        %2223 = vrot.lane.b32.xlu0 %v2212, 97
        %v2224 = vpop.permute.xlu0 %2223
        %v2229 = vadd.f32 %v2189, %v2218
        %v2230 = vadd.f32 %v2190, %v2220
        %v2231 = vadd.f32 %v2191, %v2222
        %v2232 = vadd.f32 %v2192, %v2224
        %2233 = vset.pattern.permute.xlu0 24
        %2234 = vperm.xlu0 %2233, %v1265
        %v2235 = vpop.permute.xlu0 %2234
        %2237 = vset.pattern.permute.xlu0 24
        %2238 = vperm.xlu0 %2237, %v1266
        %v2239 = vpop.permute.xlu0 %2238
        %2241 = vset.pattern.permute.xlu0 24
        %2242 = vperm.xlu0 %2241, %v1267
        %v2243 = vpop.permute.xlu0 %2242
        %2245 = vset.pattern.permute.xlu0 24
        %2246 = vperm.xlu0 %2245, %v1268
        %v2247 = vpop.permute.xlu0 %2246
        %v2249 = vmul.f32 %v1281, %v2235
        %v2250 = vmul.f32 %v1282, %v2239
        %v2251 = vmul.f32 %v1283, %v2243
        %v2252 = vmul.f32 %v1284, %v2247
        %2257 = vrot.lane.b32.xlu0 %v2249, 96
        %v2258 = vpop.permute.xlu0 %2257
        %2259 = vrot.lane.b32.xlu0 %v2250, 96
        %v2260 = vpop.permute.xlu0 %2259
        %2261 = vrot.lane.b32.xlu0 %v2251, 96
        %v2262 = vpop.permute.xlu0 %2261
        %2263 = vrot.lane.b32.xlu0 %v2252, 96
        %v2264 = vpop.permute.xlu0 %2263
        %v2269 = vadd.f32 %v2229, %v2258
        %v2270 = vadd.f32 %v2230, %v2260
        %v2271 = vadd.f32 %v2231, %v2262
        %v2272 = vadd.f32 %v2232, %v2264
        %s2273 = scalar_lea.vmem %s203, %s1258
        %vm2274 = vcmask 400384
        %2275 = vst.msk [vmem:[%s2273] sm:$0xff] %vm2274, %v2269
        %2276 = vst.msk [vmem:[%s2273 + $0x8] sm:$0xff] %vm2274, %v2270
        %2277 = vst.msk [vmem:[%s2273 + $0x10] sm:$0xff] %vm2274, %v2271
        %2278 = vst.msk [vmem:[%s2273 + $0x18] sm:$0xff] %vm2274, %v2272
      $region33: #{depthwise_conv2d.1} parent=27 // loop_footer
        %s1257 = sadd.s32 1, %s1253
      $region34: #{depthwise_conv2d.1} parent=27 // loop_footer_branch
        %1252 = sbr.rel target = $region30
      $region35: #{depthwise_conv2d.1} parent=27 // loop_exit
        _
      %s2279 = smul.u32 144, %s18
      %p2280 = scmp.lt.s32.totalorder %s17, 0
      %s2281 = scalar_select %p2280, %s17, 0
      %p2282 = scmp.lt.s32.totalorder %s2279, 287
      %s2283 = scalar_select %p2282, %s2279, 287
      %s2284 = smul.addr %s2281, 288
      %s2285 = sadd.s32 %s2283, %s2284
      %s2286 = smul.addr %s2285, 8
      %s2287 = scalar_lea.vmem %s2, %s2286
      // Predicated region
      $region36: #{depthwise_conv2d.1} parent=27 // pred_check
        %p2288 = pneg %p99
      $region37: #{depthwise_conv2d.1} parent=27 // pred_check_branch
        %2290 = sbr.rel (%p2288) target = $region39
      $region38: #{depthwise_conv2d.1} parent=27 // pred_region
        %s2291 = smul.u32 144, %s18
      $region39: #{depthwise_conv2d.1} parent=27 // pred_fallthru
        _
    $region28: #{depthwise_conv2d.1} parent=5 // pred_fallthru
      _
    %p2292 = scmp.le.s32.totalorder 2, %s8
    // Predicated region
    $region40: #{depthwise_conv2d.1} parent=5 // pred_check
      %p2293 = pneg %p2292
    $region41: #{depthwise_conv2d.1} parent=5 // pred_check_branch
      %2295 = sbr.rel (%p2293) target = $region43
    $region42: #{depthwise_conv2d.1} parent=5 // pred_region
      %s2296 = ssub.s32 %s8, 2
      // Predicated region
      $region44: #{depthwise_conv2d.1} parent=42 // pred_check
        %p2297 = pneg %p105
      $region45: #{depthwise_conv2d.1} parent=42 // pred_check_branch
        %2299 = sbr.rel (%p2297) target = $region47
      $region46: #{depthwise_conv2d.1} parent=42 // pred_region
        %s2300 = smul.u32 144, %s20
        %p2301 = scmp.lt.s32.totalorder %s19, 0
        %s2302 = scalar_select %p2301, %s19, 0
        %p2303 = scmp.lt.s32.totalorder %s2300, 287
        %s2304 = scalar_select %p2303, %s2300, 287
        %s2305 = smul.addr %s2302, 288
        %s2306 = sadd.s32 %s2304, %s2305
        %s2307 = smul.addr %s2306, 8
        %s2308 = scalar_lea.vmem %s2, %s2307
      $region47: #{depthwise_conv2d.1} parent=42 // pred_fallthru
        _
    $region43: #{depthwise_conv2d.1} parent=5 // pred_fallthru
      _
  $region6: #{depthwise_conv2d.1} parent=0 // loop_footer
    %s12 = sadd.s32 1, %s8
  $region7: #{depthwise_conv2d.1} parent=0 // loop_footer_branch
    %7 = sbr.rel target = $region3
  $region8: #{depthwise_conv2d.1} parent=0 // loop_exit
    _

</llo_original>
